<compile_context>
chip_gen: v7x
topology: tpu7x:2x2x1
jax: 0.10.0
libtpu: 0.0.40
codegen_flags: <defaults>
</compile_context>

<pallas_src>
import numpy as np
import jax
import jax.numpy as jnp
from jax import lax
from jax.experimental import pallas as pl
from jax.experimental.pallas import tpu as pltpu


_PAD = 8  # sublane offset at which activations are stashed in the VMEM scratch


# ----------------------------------------------------------------------------
# One-time probe: direction of pltpu.roll along the sublane axis.
# Returns s such that pltpu.roll(v, s * d, axis=0)[r] == v[r - d]  (np.roll -> +1).
# ----------------------------------------------------------------------------
_ROLL_SIGN = None


def _roll_down_sign():
    global _ROLL_SIGN
    if _ROLL_SIGN is None:
        try:
            def _k(x_ref, o_ref):
                o_ref[...] = pltpu.roll(x_ref[...], shift=1, axis=0)

            x = jnp.broadcast_to(jnp.arange(8, dtype=jnp.float32)[:, None], (8, 128))
            y = pl.pallas_call(
                _k, out_shape=jax.ShapeDtypeStruct((8, 128), jnp.float32))(x)
            _ROLL_SIGN = 1 if float(np.asarray(y)[1, 0]) == 0.0 else -1
        except Exception:
            _ROLL_SIGN = 1
    return _ROLL_SIGN


# ----------------------------------------------------------------------------
# Fused kernel
# ----------------------------------------------------------------------------
def _make_net_kernel(BB, T0, C, G, K, S, NBLK, Cs, Tf, roll_sign):
    f32 = jnp.float32
    G2 = 2 * G

    def roll_down(v, d):
        # result[r] = v[r - d]; wrapped rows are zeroed by the caller's causal mask.
        return pltpu.roll(v, shift=(roll_sign * d) % v.shape[0], axis=0)

    def kernel(x_ref, tidx_ref, wsg_ref, bsg_ref, wout_ref, bout_ref,
               wdil_ref, bdil_ref, wskip_ref, bskip_ref, wfin_ref, bfin_ref,
               out_ref, x_scr):
        x = x_ref[...].astype(f32)                     # (BB*T0, C) rows = (batch, time)
        skips = jnp.zeros((BB, Cs), f32)

        T = T0
        for bi in range(NBLK):                         # static unroll over blocks
            n = BB * T
            # causal masks for this block, hoisted out of the sub-block loop
            tix = tidx_ref[0:n, bi:bi + 1]             # (n, 1) per-batch time index
            pad_mask = [tix < d for d in range(1, K)]

            # ---- S gated residual sub-blocks (one fused sig|gate matmul each)
            for s in range(S):
                zz = jnp.dot(x, wsg_ref[bi, s, :, :],
                             preferred_element_type=f32)          # (n, K*2G)
                acc = zz[:, (K - 1) * G2:]                          # zero-delay tap
                for kk in range(K - 1):                             # delay d = K-1-kk
                    d = K - 1 - kk
                    piece = roll_down(zz[:, kk * G2:(kk + 1) * G2], d)
                    acc = acc + jnp.where(pad_mask[d - 1], 0.0, piece)
                acc = acc + bsg_ref[bi, s, :, :]
                gated = jnp.maximum(acc[:, :G], 0.0) * jax.nn.sigmoid(acc[:, G:])
                x = x + (jnp.dot(gated, wout_ref[bi, s, :, :],
                                 preferred_element_type=f32)
                         + bout_ref[bi, s, :, :])

            # Stash full-rate activations once; reused by the last-step gather and
            # the half-rate dilated conv.  Offset _PAD keeps the store aligned while
            # letting tap-0 read "row - 1" as a plain strided load.
            x_scr[_PAD:_PAD + n, :] = x

            # ---- skip conv on the last timestep of every batch element
            last = x_scr[pl.ds(_PAD + T - 1, BB, stride=T), :]      # (BB, C)
            skips = skips + (jnp.dot(last, wskip_ref[bi, :, :],
                                     preferred_element_type=f32)
                             + bskip_ref[bi, :, :])

            # ---- dilated conv at half rate: y[u] = W0 @ x[2u-1] + W1 @ x[2u] + b
            Th = T // 2
            n2 = BB * Th
            xe = x_scr[pl.ds(_PAD, n2, stride=2), :]                # x[2u]
            xm1 = x_scr[pl.ds(_PAD - 1, n2, stride=2), :]           # x[2u-1] (u >= 1)
            u0 = tidx_ref[0:n2, bi + 1:bi + 2] < 1                  # u == 0 -> causal 0
            tap0 = jnp.where(u0, 0.0, xm1)
            wd = wdil_ref[bi, :, :]                                 # (C, 2C) = [W0|W1]
            x = (jnp.dot(tap0, wd[:, :C], preferred_element_type=f32)
                 + jnp.dot(xe, wd[:, C:], preferred_element_type=f32)
                 + bdil_ref[bi, :, :])
            T = Th

        # ---- head: relu(final 1x1 conv + per-batch skip, broadcast over time)
        fin = jnp.dot(x, wfin_ref[...], preferred_element_type=f32) + bfin_ref[...]
        for b in range(BB):
            r0 = b * Tf
            out_ref[r0:r0 + Tf, :] = jnp.maximum(
                fin[r0:r0 + Tf, :] + skips[b:b + 1, :], 0.0).astype(out_ref.dtype)

    return kernel


# ----------------------------------------------------------------------------
# Wrapper
# ----------------------------------------------------------------------------
def _rep_spec(shape):
    nd = len(shape)
    return pl.BlockSpec(shape, lambda i, _nd=nd: (0,) * _nd)


def _vmem_limit_bytes():
    """Per-generation scoped-VMEM limit (explicit: v5e scoped default is 16 MiB)."""
    try:
        cap = int(pltpu.get_tpu_info().vmem_capacity_bytes)  # 128Mi v5e/v6e, 64Mi v7x
    except Exception:
        cap = 64 << 20                                       # conservative default
    return int(max(32 << 20, cap - (16 << 20)))


def _pick_batch_chunk(B, T0, Tf, C, ncol, work_lanes, vmem_limit):
    """Largest legal batch chunk whose working set fits ~half the VMEM limit.

    Prefers >= 2 grid steps (feeds both v7x TensorCores; harmless on v5e/v6e) and
    falls back to the whole batch when the (8,128) block alignment forces it.
    """
    per_row = 4 * (3 * C + 2 * ncol + work_lanes)        # rough f32 bytes per row
    budget_rows = max(T0, (vmem_limit // 2) // per_row)
    budget_rows = min(budget_rows, 32768, 128 * T0)      # bound unrolled working set
    divs = [d for d in range(1, B + 1) if B % d == 0]
    aligned = [d for d in divs
               if d == B or ((d * T0) % 8 == 0 and (d * Tf) % 8 == 0)]
    fits = [d for d in aligned if d * T0 <= budget_rows]
    if not fits:
        return min(aligned)                              # smallest legal chunk
    multi = [d for d in fits if B // d >= 2]
    return max(multi) if multi else max(fits)


def net_forward(x, packed):
    B, C, T0 = x.shape
    NBLK, S, _, KG2 = packed["wsg"].shape
    G2 = packed["bsg"].shape[-1]
    G = G2 // 2
    K = KG2 // G2
    Cs = packed["wskip"].shape[-1]
    assert T0 % (2 ** NBLK) == 0, "sequence length must be divisible by 2**blocks"
    Tf = T0 // (2 ** NBLK)
    NCOL = NBLK + 1

    vmem_limit = _vmem_limit_bytes()
    work_lanes = K * G2 + G2 + 2 * C + Cs + 16
    BB = _pick_batch_chunk(B, T0, Tf, C, NCOL, work_lanes, vmem_limit)
    nsteps = B // BB

    # activations: (B, C, T) -> time-major flat (B*T, C); plain-XLA layout glue.
    x_flat = jnp.transpose(x, (0, 2, 1)).reshape(B * T0, C)

    # per-level time-index columns (constant, built on host); column i is the time
    # index within each batch element at decimation level i (T_i = T0 / 2**i).
    tcol = np.zeros((BB * T0, NCOL), np.int32)
    for i in range(NCOL):
        Ti = T0 // (2 ** i)
        tcol[: BB * Ti, i] = np.tile(np.arange(Ti, dtype=np.int32), BB)
        tcol[BB * Ti:, i] = Ti
    tcol = jnp.asarray(tcol)

    kernel = _make_net_kernel(BB, T0, C, G, K, S, NBLK, Cs, Tf, _roll_down_sign())

    grid_spec = pltpu.PrefetchScalarGridSpec(
        num_scalar_prefetch=0,
        grid=(nsteps,),
        in_specs=[
            pl.BlockSpec((BB * T0, C), lambda i: (i, 0)),
            _rep_spec((BB * T0, NCOL)),
            _rep_spec(packed["wsg"].shape), _rep_spec(packed["bsg"].shape),
            _rep_spec(packed["wout"].shape), _rep_spec(packed["bout"].shape),
            _rep_spec(packed["wdil"].shape), _rep_spec(packed["bdil"].shape),
            _rep_spec(packed["wskip"].shape), _rep_spec(packed["bskip"].shape),
            _rep_spec(packed["wfin"].shape), _rep_spec(packed["bfin"].shape),
        ],
        out_specs=pl.BlockSpec((BB * Tf, Cs), lambda i: (i, 0)),
        scratch_shapes=[pltpu.VMEM((_PAD + BB * T0, C), jnp.float32)],
    )
    out_flat = pl.pallas_call(
        kernel,
        out_shape=jax.ShapeDtypeStruct((B * Tf, Cs), jnp.float32),
        grid_spec=grid_spec,
        compiler_params=pltpu.CompilerParams(
            dimension_semantics=("parallel",),
            vmem_limit_bytes=vmem_limit),
    )(x_flat, tcol,
      packed["wsg"], packed["bsg"], packed["wout"], packed["bout"],
      packed["wdil"], packed["bdil"], packed["wskip"], packed["bskip"],
      packed["wfin"], packed["bfin"])

    return jnp.transpose(out_flat.reshape(B, Tf, Cs), (0, 2, 1))   # (B, Cs, Tf)


# ----------------------------------------------------------------------------
# One-time weight repacking (hoisted out of the forward path)
# ----------------------------------------------------------------------------
def pack_params(params):
    blks = params["blocks"]
    K = blks[0]["gated"][0]["sig_w"].shape[-1]

    def pack_block(bp):
        wsg_s, bsg_s, wout_s, bout_s = [], [], [], []
        for g in bp["gated"]:
            taps = [jnp.concatenate([g["sig_w"][:, :, kk].T, g["gate_w"][:, :, kk].T],
                                    axis=1) for kk in range(K)]          # K x (C, 2G)
            wsg_s.append(jnp.concatenate(taps, axis=1))                   # (C, K*2G)
            bsg_s.append(jnp.concatenate([g["sig_b"], g["gate_b"]])[None, :])
            wout_s.append(g["out_w"][:, :, 0].T)                          # (G, C)
            bout_s.append(g["out_b"][None, :])                            # (1, C)
        wdil = jnp.concatenate([bp["dil_w"][:, :, 0].T, bp["dil_w"][:, :, 1].T],
                               axis=1)                                    # (C, 2C)
        return (jnp.stack(wsg_s), jnp.stack(bsg_s), jnp.stack(wout_s), jnp.stack(bout_s),
                wdil, bp["dil_b"][None, :],
                bp["skip_w"][:, :, 0].T, bp["skip_b"][None, :])

    per = [pack_block(bp) for bp in blks]
    return dict(
        wsg=jnp.stack([p[0] for p in per]),    # (NBLK, S, C, K*2G)
        bsg=jnp.stack([p[1] for p in per]),    # (NBLK, S, 1, 2G)
        wout=jnp.stack([p[2] for p in per]),   # (NBLK, S, G, C)
        bout=jnp.stack([p[3] for p in per]),   # (NBLK, S, 1, C)
        wdil=jnp.stack([p[4] for p in per]),   # (NBLK, C, 2C)
        bdil=jnp.stack([p[5] for p in per]),   # (NBLK, 1, C)
        wskip=jnp.stack([p[6] for p in per]),  # (NBLK, C, Cs)
        bskip=jnp.stack([p[7] for p in per]),  # (NBLK, 1, Cs)
        wfin=params["final_w"][:, :, 0].T,     # (C, Cs)
        bfin=params["final_b"][None, :],       # (1, Cs)
    )


# ----------------------------------------------------------------------------
# Deterministic parameter init (PyTorch Conv1d-like uniform init)
# ----------------------------------------------------------------------------
def init_params(key, *, blocks, cfg):
    C, G, Cs = cfg["residual_channels"], cfg["gate_channels"], cfg["skip_channels"]
    S, K = cfg["sub_blocks"], cfg["kernels"]
    # TODO(synk): cfg.use_bn / head_channels / mixture_size are unused in Net.forward.

    def conv(k, o, i, ksz):
        bound = 1.0 / np.sqrt(i * ksz)
        kw, kb = jax.random.split(k)
        w = jax.random.uniform(kw, (o, i, ksz), jnp.float32, -bound, bound)
        b = jax.random.uniform(kb, (o,), jnp.float32, -bound, bound)
        return w, b

    keys = jax.random.split(key, blocks + 1)
    blk_params = []
    for bi in range(blocks):
        bkeys = jax.random.split(keys[bi], 3 * S + 2)
        gated = []
        for s in range(S):
            sw, sb = conv(bkeys[3 * s + 0], G, C, K)
            gw, gb = conv(bkeys[3 * s + 1], G, C, K)
            ow, ob = conv(bkeys[3 * s + 2], C, G, 1)
            gated.append(dict(sig_w=sw, sig_b=sb, gate_w=gw, gate_b=gb,
                              out_w=ow, out_b=ob))
        skw, skb = conv(bkeys[3 * S], Cs, C, 1)
        dw, db = conv(bkeys[3 * S + 1], C, C, 2)
        blk_params.append(dict(gated=gated, skip_w=skw, skip_b=skb,
                               dil_w=dw, dil_b=db))
    fw, fb = conv(keys[blocks], Cs, C, 1)
    return dict(blocks=blk_params, final_w=fw, final_b=fb)


# ----------------------------------------------------------------------------
# Pure-JAX reference (mirrors PyTorch semantics) for verification
# ----------------------------------------------------------------------------
def _ref_conv1d(x, w, b, stride=1):
    y = lax.conv_general_dilated(x, w, window_strides=(stride,), padding="VALID",
                                 dimension_numbers=("NCH", "OIH", "NCH"))
    return y + b[None, :, None]


def ref_net(x, params, kernels):
    skips = None
    for bp in params["blocks"]:
        for g in bp["gated"]:
            xp = jnp.pad(x, ((0, 0), (0, 0), (kernels - 1, 0)))
            sig = jax.nn.relu(_ref_conv1d(xp, g["sig_w"], g["sig_b"]))
            gate = jax.nn.sigmoid(_ref_conv1d(xp, g["gate_w"], g["gate_b"]))
            x = x + _ref_conv1d(sig * gate, g["out_w"], g["out_b"])
        skip = _ref_conv1d(x[:, :, -1:], bp["skip_w"], bp["skip_b"])
        xd = jnp.pad(x, ((0, 0), (0, 0), (1, 0)))
        x = _ref_conv1d(xd, bp["dil_w"], bp["dil_b"], stride=2)
        skips = skip if skips is None else skips + skip
    skips = skips + _ref_conv1d(x, params["final_w"], params["final_b"])
    return jax.nn.relu(skips)


# ----------------------------------------------------------------------------
if __name__ == "__main__":
    cfg = dict(use_bn=False, sub_blocks=2, kernels=3, residual_channels=4,
               gate_channels=8, skip_channels=8, head_channels=16, mixture_size=3)
    blocks = 2
    B, T = 2, 8  # T must be divisible by 2**blocks

    _roll_down_sign()  # one-time hardware probe, outside jit

    key = jax.random.PRNGKey(0)
    pkey, xkey = jax.random.split(key)
    params = init_params(pkey, blocks=blocks, cfg=cfg)
    packed = pack_params(params)                     # one-time weight repacking
    x = jax.random.normal(xkey, (B, cfg["residual_channels"], T), jnp.float32)

    out = jax.jit(net_forward)(x, packed)
    out = jax.block_until_ready(out)

    ref = ref_net(x, params, cfg["kernels"])
    np.testing.assert_allclose(np.asarray(out), np.asarray(ref), rtol=1e-3, atol=1e-3)
    print("KERNEL_OK")
</pallas_src>

<mosaic_0001>
module attributes {stable_mosaic.version = 11 : i64} {
  func.func @_k(%arg0: memref<8x128xf32, #tpu.memory_space<vmem>>, %arg1: memref<8x128xf32, #tpu.memory_space<vmem>>) attributes {dimension_semantics = [], scalar_prefetch = 0 : i64, scratch_operands = 0 : i64, tpu.core_type = #tpu.core_type<tc>} {
    %c0 = arith.constant 0 : index
    %c0_0 = arith.constant 0 : index
    %0 = vector.load %arg0[%c0, %c0_0] : memref<8x128xf32, #tpu.memory_space<vmem>>, vector<8x128xf32>
    %c1_i32 = arith.constant 1 : i32
    %1 = tpu.dynamic_rotate %0 by %c1_i32 dim 0 : vector<8x128xf32>, i32 -> vector<8x128xf32>
    %c0_1 = arith.constant 0 : index
    %c0_2 = arith.constant 0 : index
    %2 = vector.load %arg1[%c0_1, %c0_2] : memref<8x128xf32, #tpu.memory_space<vmem>>, vector<8x128xf32>
    tpu.vector_store %arg1[%c0_1, %c0_2], %1 {strides = array<i32>} : memref<8x128xf32, #tpu.memory_space<vmem>>, vector<8x128xf32>,
    return
  }
}

module attributes {stable_mosaic.version = 11 : i64} {
  func.func @kernel(%arg0: i32, %arg1: memref<16x4xf32, #tpu.memory_space<vmem>>, %arg2: memref<16x3xi32, #tpu.memory_space<vmem>>, %arg3: memref<2x2x4x48xf32, #tpu.memory_space<vmem>>, %arg4: memref<2x2x1x16xf32, #tpu.memory_space<vmem>>, %arg5: memref<2x2x8x4xf32, #tpu.memory_space<vmem>>, %arg6: memref<2x2x1x4xf32, #tpu.memory_space<vmem>>, %arg7: memref<2x4x8xf32, #tpu.memory_space<vmem>>, %arg8: memref<2x1x4xf32, #tpu.memory_space<vmem>>, %arg9: memref<2x4x8xf32, #tpu.memory_space<vmem>>, %arg10: memref<2x1x8xf32, #tpu.memory_space<vmem>>, %arg11: memref<4x8xf32, #tpu.memory_space<vmem>>, %arg12: memref<1x8xf32, #tpu.memory_space<vmem>>, %arg13: memref<4x8xf32, #tpu.memory_space<vmem>>, %arg14: memref<24x4xf32, #tpu.memory_space<vmem>>) attributes {dimension_semantics = [#tpu.dimension_semantics<parallel>], iteration_bounds = array<i64: 1>, scalar_prefetch = 0 : i64, scratch_operands = 1 : i64, tpu.core_type = #tpu.core_type<tc>, window_params = [{transform_indices = @transform_0, window_bounds = array<i64: 16, 4>}, {pipeline_mode = #tpu.pipeline_mode<synchronous>, transform_indices = @transform_1, window_bounds = array<i64: 16, 3>}, {pipeline_mode = #tpu.pipeline_mode<synchronous>, transform_indices = @transform_2, window_bounds = array<i64: 2, 2, 4, 48>}, {pipeline_mode = #tpu.pipeline_mode<synchronous>, transform_indices = @transform_3, window_bounds = array<i64: 2, 2, 1, 16>}, {pipeline_mode = #tpu.pipeline_mode<synchronous>, transform_indices = @transform_4, window_bounds = array<i64: 2, 2, 8, 4>}, {pipeline_mode = #tpu.pipeline_mode<synchronous>, transform_indices = @transform_5, window_bounds = array<i64: 2, 2, 1, 4>}, {pipeline_mode = #tpu.pipeline_mode<synchronous>, transform_indices = @transform_6, window_bounds = array<i64: 2, 4, 8>}, {pipeline_mode = #tpu.pipeline_mode<synchronous>, transform_indices = @transform_7, window_bounds = array<i64: 2, 1, 4>}, {pipeline_mode = #tpu.pipeline_mode<synchronous>, transform_indices = @transform_8, window_bounds = array<i64: 2, 4, 8>}, {pipeline_mode = #tpu.pipeline_mode<synchronous>, transform_indices = @transform_9, window_bounds = array<i64: 2, 1, 8>}, {pipeline_mode = #tpu.pipeline_mode<synchronous>, transform_indices = @transform_10, window_bounds = array<i64: 4, 8>}, {pipeline_mode = #tpu.pipeline_mode<synchronous>, transform_indices = @transform_11, window_bounds = array<i64: 1, 8>}, {transform_indices = @transform_12, window_bounds = array<i64: 4, 8>}]} {
    %c0 = arith.constant 0 : index
    %c0_0 = arith.constant 0 : index
    %0 = vector.load %arg1[%c0, %c0_0] : memref<16x4xf32, #tpu.memory_space<vmem>>, vector<16x4xf32>
    %cst = arith.constant 0.000000e+00 : f32
    %1 = vector.broadcast %cst : f32 to vector<2x8xf32>
    %c0_1 = arith.constant 0 : index
    %c0_2 = arith.constant 0 : index
    %2 = vector.load %arg2[%c0_1, %c0_2] : memref<16x3xi32, #tpu.memory_space<vmem>>, vector<16x1xi32>
    %c1_i32 = arith.constant 1 : i32
    %3 = vector.broadcast %c1_i32 : i32 to vector<16x1xi32>
    %4 = arith.cmpi slt, %2, %3 : vector<16x1xi32>
    %c2_i32 = arith.constant 2 : i32
    %5 = vector.broadcast %c2_i32 : i32 to vector<16x1xi32>
    %6 = arith.cmpi slt, %2, %5 : vector<16x1xi32>
    %c0_3 = arith.constant 0 : index
    %c0_4 = arith.constant 0 : index
    %c0_5 = arith.constant 0 : index
    %c0_6 = arith.constant 0 : index
    %7 = vector.load %arg3[%c0_3, %c0_4, %c0_5, %c0_6] : memref<2x2x4x48xf32, #tpu.memory_space<vmem>>, vector<1x1x4x48xf32>
    %8 = vector.shape_cast %7 : vector<1x1x4x48xf32> to vector<4x48xf32>
    %cst_7 = arith.constant dense<0.000000e+00> : vector<16x48xf32>
    %9 = tpu.matmul %0, %8, %cst_7 {dimension_numbers = #tpu.dot_dimension_numbers<[1], [0], [0], [1], [0, 0, 1, 1], [], []>} : vector<16x4xf32>, vector<4x48xf32>, vector<16x48xf32> -> vector<16x48xf32>
    %10 = vector.extract_strided_slice %9 {offsets = [0, 32], sizes = [16, 16], strides = [1, 1]} : vector<16x48xf32> to vector<16x16xf32>
    %11 = vector.extract_strided_slice %9 {offsets = [0, 0], sizes = [16, 16], strides = [1, 1]} : vector<16x48xf32> to vector<16x16xf32>
    %c2_i32_8 = arith.constant 2 : i32
    %12 = tpu.dynamic_rotate %11 by %c2_i32_8 dim 0 : vector<16x16xf32>, i32 -> vector<16x16xf32>
    %cst_9 = arith.constant 0.000000e+00 : f32
    %13 = vector.shape_cast %6 : vector<16x1xi1> to vector<16x1xi1>
    %14 = vector.broadcast %13 : vector<16x1xi1> to vector<16x16xi1>
    %15 = vector.broadcast %cst_9 : f32 to vector<16x16xf32>
    %16 = arith.select %14, %15, %12 : vector<16x16xi1>, vector<16x16xf32>
    %17 = arith.addf %10, %16 : vector<16x16xf32>
    %18 = vector.extract_strided_slice %9 {offsets = [0, 16], sizes = [16, 16], strides = [1, 1]} : vector<16x48xf32> to vector<16x16xf32>
    %c1_i32_10 = arith.constant 1 : i32
    %19 = tpu.dynamic_rotate %18 by %c1_i32_10 dim 0 : vector<16x16xf32>, i32 -> vector<16x16xf32>
    %cst_11 = arith.constant 0.000000e+00 : f32
    %20 = vector.shape_cast %4 : vector<16x1xi1> to vector<16x1xi1>
    %21 = vector.broadcast %20 : vector<16x1xi1> to vector<16x16xi1>
    %22 = vector.broadcast %cst_11 : f32 to vector<16x16xf32>
    %23 = arith.select %21, %22, %19 : vector<16x16xi1>, vector<16x16xf32>
    %24 = arith.addf %17, %23 : vector<16x16xf32>
    %c0_12 = arith.constant 0 : index
    %c0_13 = arith.constant 0 : index
    %c0_14 = arith.constant 0 : index
    %c0_15 = arith.constant 0 : index
    %25 = vector.load %arg4[%c0_12, %c0_13, %c0_14, %c0_15] : memref<2x2x1x16xf32, #tpu.memory_space<vmem>>, vector<1x1x1x16xf32>
    %26 = vector.shape_cast %25 : vector<1x1x1x16xf32> to vector<1x16xf32>
    %27 = vector.broadcast %26 : vector<1x16xf32> to vector<16x16xf32>
    %28 = arith.addf %24, %27 : vector<16x16xf32>
    %29 = vector.extract_strided_slice %28 {offsets = [0, 0], sizes = [16, 8], strides = [1, 1]} : vector<16x16xf32> to vector<16x8xf32>
    %cst_16 = arith.constant 0.000000e+00 : f32
    %30 = vector.broadcast %cst_16 : f32 to vector<16x8xf32>
    %31 = arith.maximumf %29, %30 : vector<16x8xf32>
    %32 = vector.extract_strided_slice %28 {offsets = [0, 8], sizes = [16, 8], strides = [1, 1]} : vector<16x16xf32> to vector<16x8xf32>
    %33 = arith.negf %32 : vector<16x8xf32>
    %34 = math.exp %33 : vector<16x8xf32>
    %cst_17 = arith.constant 1.000000e+00 : f32
    %35 = vector.broadcast %cst_17 : f32 to vector<16x8xf32>
    %36 = arith.addf %35, %34 : vector<16x8xf32>
    %37 = arith.divf %35, %36 : vector<16x8xf32>
    %38 = arith.mulf %31, %37 : vector<16x8xf32>
    %c0_18 = arith.constant 0 : index
    %c0_19 = arith.constant 0 : index
    %c0_20 = arith.constant 0 : index
    %c0_21 = arith.constant 0 : index
    %39 = vector.load %arg5[%c0_18, %c0_19, %c0_20, %c0_21] : memref<2x2x8x4xf32, #tpu.memory_space<vmem>>, vector<1x1x8x4xf32>
    %40 = vector.shape_cast %39 : vector<1x1x8x4xf32> to vector<8x4xf32>
    %cst_22 = arith.constant dense<0.000000e+00> : vector<16x4xf32>
    %41 = tpu.matmul %38, %40, %cst_22 {dimension_numbers = #tpu.dot_dimension_numbers<[1], [0], [0], [1], [0, 0, 1, 1], [], []>} : vector<16x8xf32>, vector<8x4xf32>, vector<16x4xf32> -> vector<16x4xf32>
    %c0_23 = arith.constant 0 : index
    %c0_24 = arith.constant 0 : index
    %c0_25 = arith.constant 0 : index
    %c0_26 = arith.constant 0 : index
    %42 = vector.load %arg6[%c0_23, %c0_24, %c0_25, %c0_26] : memref<2x2x1x4xf32, #tpu.memory_space<vmem>>, vector<1x1x1x4xf32>
    %43 = vector.shape_cast %42 : vector<1x1x1x4xf32> to vector<1x4xf32>
    %44 = vector.broadcast %43 : vector<1x4xf32> to vector<16x4xf32>
    %45 = arith.addf %41, %44 : vector<16x4xf32>
    %46 = arith.addf %0, %45 : vector<16x4xf32>
    %c0_27 = arith.constant 0 : index
    %c1 = arith.constant 1 : index
    %c0_28 = arith.constant 0 : index
    %c0_29 = arith.constant 0 : index
    %47 = vector.load %arg3[%c0_27, %c1, %c0_28, %c0_29] : memref<2x2x4x48xf32, #tpu.memory_space<vmem>>, vector<1x1x4x48xf32>
    %48 = vector.shape_cast %47 : vector<1x1x4x48xf32> to vector<4x48xf32>
    %cst_30 = arith.constant dense<0.000000e+00> : vector<16x48xf32>
    %49 = tpu.matmul %46, %48, %cst_30 {dimension_numbers = #tpu.dot_dimension_numbers<[1], [0], [0], [1], [0, 0, 1, 1], [], []>} : vector<16x4xf32>, vector<4x48xf32>, vector<16x48xf32> -> vector<16x48xf32>
    %50 = vector.extract_strided_slice %49 {offsets = [0, 32], sizes = [16, 16], strides = [1, 1]} : vector<16x48xf32> to vector<16x16xf32>
    %51 = vector.extract_strided_slice %49 {offsets = [0, 0], sizes = [16, 16], strides = [1, 1]} : vector<16x48xf32> to vector<16x16xf32>
    %c2_i32_31 = arith.constant 2 : i32
    %52 = tpu.dynamic_rotate %51 by %c2_i32_31 dim 0 : vector<16x16xf32>, i32 -> vector<16x16xf32>
    %cst_32 = arith.constant 0.000000e+00 : f32
    %53 = vector.shape_cast %6 : vector<16x1xi1> to vector<16x1xi1>
    %54 = vector.broadcast %53 : vector<16x1xi1> to vector<16x16xi1>
    %55 = vector.broadcast %cst_32 : f32 to vector<16x16xf32>
    %56 = arith.select %54, %55, %52 : vector<16x16xi1>, vector<16x16xf32>
    %57 = arith.addf %50, %56 : vector<16x16xf32>
    %58 = vector.extract_strided_slice %49 {offsets = [0, 16], sizes = [16, 16], strides = [1, 1]} : vector<16x48xf32> to vector<16x16xf32>
    %c1_i32_33 = arith.constant 1 : i32
    %59 = tpu.dynamic_rotate %58 by %c1_i32_33 dim 0 : vector<16x16xf32>, i32 -> vector<16x16xf32>
    %cst_34 = arith.constant 0.000000e+00 : f32
    %60 = vector.shape_cast %4 : vector<16x1xi1> to vector<16x1xi1>
    %61 = vector.broadcast %60 : vector<16x1xi1> to vector<16x16xi1>
    %62 = vector.broadcast %cst_34 : f32 to vector<16x16xf32>
    %63 = arith.select %61, %62, %59 : vector<16x16xi1>, vector<16x16xf32>
    %64 = arith.addf %57, %63 : vector<16x16xf32>
    %c0_35 = arith.constant 0 : index
    %c1_36 = arith.constant 1 : index
    %c0_37 = arith.constant 0 : index
    %c0_38 = arith.constant 0 : index
    %65 = vector.load %arg4[%c0_35, %c1_36, %c0_37, %c0_38] : memref<2x2x1x16xf32, #tpu.memory_space<vmem>>, vector<1x1x1x16xf32>
    %66 = vector.shape_cast %65 : vector<1x1x1x16xf32> to vector<1x16xf32>
    %67 = vector.broadcast %66 : vector<1x16xf32> to vector<16x16xf32>
    %68 = arith.addf %64, %67 : vector<16x16xf32>
    %69 = vector.extract_strided_slice %68 {offsets = [0, 0], sizes = [16, 8], strides = [1, 1]} : vector<16x16xf32> to vector<16x8xf32>
    %cst_39 = arith.constant 0.000000e+00 : f32
    %70 = vector.broadcast %cst_39 : f32 to vector<16x8xf32>
    %71 = arith.maximumf %69, %70 : vector<16x8xf32>
    %72 = vector.extract_strided_slice %68 {offsets = [0, 8], sizes = [16, 8], strides = [1, 1]} : vector<16x16xf32> to vector<16x8xf32>
    %73 = arith.negf %72 : vector<16x8xf32>
    %74 = math.exp %73 : vector<16x8xf32>
    %cst_40 = arith.constant 1.000000e+00 : f32
    %75 = vector.broadcast %cst_40 : f32 to vector<16x8xf32>
    %76 = arith.addf %75, %74 : vector<16x8xf32>
    %77 = arith.divf %75, %76 : vector<16x8xf32>
    %78 = arith.mulf %71, %77 : vector<16x8xf32>
    %c0_41 = arith.constant 0 : index
    %c1_42 = arith.constant 1 : index
    %c0_43 = arith.constant 0 : index
    %c0_44 = arith.constant 0 : index
    %79 = vector.load %arg5[%c0_41, %c1_42, %c0_43, %c0_44] : memref<2x2x8x4xf32, #tpu.memory_space<vmem>>, vector<1x1x8x4xf32>
    %80 = vector.shape_cast %79 : vector<1x1x8x4xf32> to vector<8x4xf32>
    %cst_45 = arith.constant dense<0.000000e+00> : vector<16x4xf32>
    %81 = tpu.matmul %78, %80, %cst_45 {dimension_numbers = #tpu.dot_dimension_numbers<[1], [0], [0], [1], [0, 0, 1, 1], [], []>} : vector<16x8xf32>, vector<8x4xf32>, vector<16x4xf32> -> vector<16x4xf32>
    %c0_46 = arith.constant 0 : index
    %c1_47 = arith.constant 1 : index
    %c0_48 = arith.constant 0 : index
    %c0_49 = arith.constant 0 : index
    %82 = vector.load %arg6[%c0_46, %c1_47, %c0_48, %c0_49] : memref<2x2x1x4xf32, #tpu.memory_space<vmem>>, vector<1x1x1x4xf32>
    %83 = vector.shape_cast %82 : vector<1x1x1x4xf32> to vector<1x4xf32>
    %84 = vector.broadcast %83 : vector<1x4xf32> to vector<16x4xf32>
    %85 = arith.addf %81, %84 : vector<16x4xf32>
    %86 = arith.addf %46, %85 : vector<16x4xf32>
    %c8 = arith.constant 8 : index
    %c0_50 = arith.constant 0 : index
    %87 = vector.load %arg14[%c8, %c0_50] : memref<24x4xf32, #tpu.memory_space<vmem>>, vector<16x4xf32>
    tpu.vector_store %arg14[%c8, %c0_50], %86 {strides = array<i32>} : memref<24x4xf32, #tpu.memory_space<vmem>>, vector<16x4xf32>,
    %c15 = arith.constant 15 : index
    %c0_51 = arith.constant 0 : index
    %88 = tpu.strided_load %arg14[%c15, %c0_51] {strides = array<i32: 8, 1>} : memref<24x4xf32, #tpu.memory_space<vmem>>, vector<2x4xf32>
    %c0_52 = arith.constant 0 : index
    %c0_53 = arith.constant 0 : index
    %c0_54 = arith.constant 0 : index
    %89 = vector.load %arg9[%c0_52, %c0_53, %c0_54] : memref<2x4x8xf32, #tpu.memory_space<vmem>>, vector<1x4x8xf32>
    %90 = vector.shape_cast %89 : vector<1x4x8xf32> to vector<4x8xf32>
    %cst_55 = arith.constant dense<0.000000e+00> : vector<2x8xf32>
    %91 = tpu.matmul %88, %90, %cst_55 {dimension_numbers = #tpu.dot_dimension_numbers<[1], [0], [0], [1], [0, 0, 1, 1], [], []>} : vector<2x4xf32>, vector<4x8xf32>, vector<2x8xf32> -> vector<2x8xf32>
    %c0_56 = arith.constant 0 : index
    %c0_57 = arith.constant 0 : index
    %c0_58 = arith.constant 0 : index
    %92 = vector.load %arg10[%c0_56, %c0_57, %c0_58] : memref<2x1x8xf32, #tpu.memory_space<vmem>>, vector<1x1x8xf32>
    %93 = vector.shape_cast %92 : vector<1x1x8xf32> to vector<1x8xf32>
    %94 = vector.broadcast %93 : vector<1x8xf32> to vector<2x8xf32>
    %95 = arith.addf %91, %94 : vector<2x8xf32>
    %96 = arith.addf %1, %95 : vector<2x8xf32>
    %c8_59 = arith.constant 8 : index
    %c0_60 = arith.constant 0 : index
    %97 = tpu.strided_load %arg14[%c8_59, %c0_60] {strides = array<i32: 2, 1>} : memref<24x4xf32, #tpu.memory_space<vmem>>, vector<8x4xf32>
    %c7 = arith.constant 7 : index
    %c0_61 = arith.constant 0 : index
    %98 = tpu.strided_load %arg14[%c7, %c0_61] {strides = array<i32: 2, 1>} : memref<24x4xf32, #tpu.memory_space<vmem>>, vector<8x4xf32>
    %c0_62 = arith.constant 0 : index
    %c1_63 = arith.constant 1 : index
    %99 = vector.load %arg2[%c0_62, %c1_63] : memref<16x3xi32, #tpu.memory_space<vmem>>, vector<8x1xi32>
    %c1_i32_64 = arith.constant 1 : i32
    %100 = vector.broadcast %c1_i32_64 : i32 to vector<8x1xi32>
    %101 = arith.cmpi slt, %99, %100 : vector<8x1xi32>
    %cst_65 = arith.constant 0.000000e+00 : f32
    %102 = vector.shape_cast %101 : vector<8x1xi1> to vector<8x1xi1>
    %103 = vector.broadcast %102 : vector<8x1xi1> to vector<8x4xi1>
    %104 = vector.broadcast %cst_65 : f32 to vector<8x4xf32>
    %105 = arith.select %103, %104, %98 : vector<8x4xi1>, vector<8x4xf32>
    %c0_66 = arith.constant 0 : index
    %c0_67 = arith.constant 0 : index
    %c0_68 = arith.constant 0 : index
    %106 = vector.load %arg7[%c0_66, %c0_67, %c0_68] : memref<2x4x8xf32, #tpu.memory_space<vmem>>, vector<1x4x8xf32>
    %107 = vector.shape_cast %106 : vector<1x4x8xf32> to vector<4x8xf32>
    %108 = vector.extract_strided_slice %107 {offsets = [0, 0], sizes = [4, 4], strides = [1, 1]} : vector<4x8xf32> to vector<4x4xf32>
    %cst_69 = arith.constant dense<0.000000e+00> : vector<8x4xf32>
    %109 = tpu.matmul %105, %108, %cst_69 {dimension_numbers = #tpu.dot_dimension_numbers<[1], [0], [0], [1], [0, 0, 1, 1], [], []>} : vector<8x4xf32>, vector<4x4xf32>, vector<8x4xf32> -> vector<8x4xf32>
    %110 = vector.extract_strided_slice %107 {offsets = [0, 4], sizes = [4, 4], strides = [1, 1]} : vector<4x8xf32> to vector<4x4xf32>
    %cst_70 = arith.constant dense<0.000000e+00> : vector<8x4xf32>
    %111 = tpu.matmul %97, %110, %cst_70 {dimension_numbers = #tpu.dot_dimension_numbers<[1], [0], [0], [1], [0, 0, 1, 1], [], []>} : vector<8x4xf32>, vector<4x4xf32>, vector<8x4xf32> -> vector<8x4xf32>
    %112 = arith.addf %109, %111 : vector<8x4xf32>
    %c0_71 = arith.constant 0 : index
    %c0_72 = arith.constant 0 : index
    %c0_73 = arith.constant 0 : index
    %113 = vector.load %arg8[%c0_71, %c0_72, %c0_73] : memref<2x1x4xf32, #tpu.memory_space<vmem>>, vector<1x1x4xf32>
    %114 = vector.shape_cast %113 : vector<1x1x4xf32> to vector<1x4xf32>
    %115 = vector.broadcast %114 : vector<1x4xf32> to vector<8x4xf32>
    %116 = arith.addf %112, %115 : vector<8x4xf32>
    %c0_74 = arith.constant 0 : index
    %c1_75 = arith.constant 1 : index
    %117 = vector.load %arg2[%c0_74, %c1_75] : memref<16x3xi32, #tpu.memory_space<vmem>>, vector<8x1xi32>
    %c1_i32_76 = arith.constant 1 : i32
    %118 = vector.broadcast %c1_i32_76 : i32 to vector<8x1xi32>
    %119 = arith.cmpi slt, %117, %118 : vector<8x1xi32>
    %c2_i32_77 = arith.constant 2 : i32
    %120 = vector.broadcast %c2_i32_77 : i32 to vector<8x1xi32>
    %121 = arith.cmpi slt, %117, %120 : vector<8x1xi32>
    %c1_78 = arith.constant 1 : index
    %c0_79 = arith.constant 0 : index
    %c0_80 = arith.constant 0 : index
    %c0_81 = arith.constant 0 : index
    %122 = vector.load %arg3[%c1_78, %c0_79, %c0_80, %c0_81] : memref<2x2x4x48xf32, #tpu.memory_space<vmem>>, vector<1x1x4x48xf32>
    %123 = vector.shape_cast %122 : vector<1x1x4x48xf32> to vector<4x48xf32>
    %cst_82 = arith.constant dense<0.000000e+00> : vector<8x48xf32>
    %124 = tpu.matmul %116, %123, %cst_82 {dimension_numbers = #tpu.dot_dimension_numbers<[1], [0], [0], [1], [0, 0, 1, 1], [], []>} : vector<8x4xf32>, vector<4x48xf32>, vector<8x48xf32> -> vector<8x48xf32>
    %125 = vector.extract_strided_slice %124 {offsets = [0, 32], sizes = [8, 16], strides = [1, 1]} : vector<8x48xf32> to vector<8x16xf32>
    %126 = vector.extract_strided_slice %124 {offsets = [0, 0], sizes = [8, 16], strides = [1, 1]} : vector<8x48xf32> to vector<8x16xf32>
    %c2_i32_83 = arith.constant 2 : i32
    %127 = tpu.dynamic_rotate %126 by %c2_i32_83 dim 0 : vector<8x16xf32>, i32 -> vector<8x16xf32>
    %cst_84 = arith.constant 0.000000e+00 : f32
    %128 = vector.shape_cast %121 : vector<8x1xi1> to vector<8x1xi1>
    %129 = vector.broadcast %128 : vector<8x1xi1> to vector<8x16xi1>
    %130 = vector.broadcast %cst_84 : f32 to vector<8x16xf32>
    %131 = arith.select %129, %130, %127 : vector<8x16xi1>, vector<8x16xf32>
    %132 = arith.addf %125, %131 : vector<8x16xf32>
    %133 = vector.extract_strided_slice %124 {offsets = [0, 16], sizes = [8, 16], strides = [1, 1]} : vector<8x48xf32> to vector<8x16xf32>
    %c1_i32_85 = arith.constant 1 : i32
    %134 = tpu.dynamic_rotate %133 by %c1_i32_85 dim 0 : vector<8x16xf32>, i32 -> vector<8x16xf32>
    %cst_86 = arith.constant 0.000000e+00 : f32
    %135 = vector.shape_cast %119 : vector<8x1xi1> to vector<8x1xi1>
    %136 = vector.broadcast %135 : vector<8x1xi1> to vector<8x16xi1>
    %137 = vector.broadcast %cst_86 : f32 to vector<8x16xf32>
    %138 = arith.select %136, %137, %134 : vector<8x16xi1>, vector<8x16xf32>
    %139 = arith.addf %132, %138 : vector<8x16xf32>
    %c1_87 = arith.constant 1 : index
    %c0_88 = arith.constant 0 : index
    %c0_89 = arith.constant 0 : index
    %c0_90 = arith.constant 0 : index
    %140 = vector.load %arg4[%c1_87, %c0_88, %c0_89, %c0_90] : memref<2x2x1x16xf32, #tpu.memory_space<vmem>>, vector<1x1x1x16xf32>
    %141 = vector.shape_cast %140 : vector<1x1x1x16xf32> to vector<1x16xf32>
    %142 = vector.broadcast %141 : vector<1x16xf32> to vector<8x16xf32>
    %143 = arith.addf %139, %142 : vector<8x16xf32>
    %144 = vector.extract_strided_slice %143 {offsets = [0, 0], sizes = [8, 8], strides = [1, 1]} : vector<8x16xf32> to vector<8x8xf32>
    %cst_91 = arith.constant 0.000000e+00 : f32
    %145 = vector.broadcast %cst_91 : f32 to vector<8x8xf32>
    %146 = arith.maximumf %144, %145 : vector<8x8xf32>
    %147 = vector.extract_strided_slice %143 {offsets = [0, 8], sizes = [8, 8], strides = [1, 1]} : vector<8x16xf32> to vector<8x8xf32>
    %148 = arith.negf %147 : vector<8x8xf32>
    %149 = math.exp %148 : vector<8x8xf32>
    %cst_92 = arith.constant 1.000000e+00 : f32
    %150 = vector.broadcast %cst_92 : f32 to vector<8x8xf32>
    %151 = arith.addf %150, %149 : vector<8x8xf32>
    %152 = arith.divf %150, %151 : vector<8x8xf32>
    %153 = arith.mulf %146, %152 : vector<8x8xf32>
    %c1_93 = arith.constant 1 : index
    %c0_94 = arith.constant 0 : index
    %c0_95 = arith.constant 0 : index
    %c0_96 = arith.constant 0 : index
    %154 = vector.load %arg5[%c1_93, %c0_94, %c0_95, %c0_96] : memref<2x2x8x4xf32, #tpu.memory_space<vmem>>, vector<1x1x8x4xf32>
    %155 = vector.shape_cast %154 : vector<1x1x8x4xf32> to vector<8x4xf32>
    %cst_97 = arith.constant dense<0.000000e+00> : vector<8x4xf32>
    %156 = tpu.matmul %153, %155, %cst_97 {dimension_numbers = #tpu.dot_dimension_numbers<[1], [0], [0], [1], [0, 0, 1, 1], [], []>} : vector<8x8xf32>, vector<8x4xf32>, vector<8x4xf32> -> vector<8x4xf32>
    %c1_98 = arith.constant 1 : index
    %c0_99 = arith.constant 0 : index
    %c0_100 = arith.constant 0 : index
    %c0_101 = arith.constant 0 : index
    %157 = vector.load %arg6[%c1_98, %c0_99, %c0_100, %c0_101] : memref<2x2x1x4xf32, #tpu.memory_space<vmem>>, vector<1x1x1x4xf32>
    %158 = vector.shape_cast %157 : vector<1x1x1x4xf32> to vector<1x4xf32>
    %159 = vector.broadcast %158 : vector<1x4xf32> to vector<8x4xf32>
    %160 = arith.addf %156, %159 : vector<8x4xf32>
    %161 = arith.addf %116, %160 : vector<8x4xf32>
    %c1_102 = arith.constant 1 : index
    %c1_103 = arith.constant 1 : index
    %c0_104 = arith.constant 0 : index
    %c0_105 = arith.constant 0 : index
    %162 = vector.load %arg3[%c1_102, %c1_103, %c0_104, %c0_105] : memref<2x2x4x48xf32, #tpu.memory_space<vmem>>, vector<1x1x4x48xf32>
    %163 = vector.shape_cast %162 : vector<1x1x4x48xf32> to vector<4x48xf32>
    %cst_106 = arith.constant dense<0.000000e+00> : vector<8x48xf32>
    %164 = tpu.matmul %161, %163, %cst_106 {dimension_numbers = #tpu.dot_dimension_numbers<[1], [0], [0], [1], [0, 0, 1, 1], [], []>} : vector<8x4xf32>, vector<4x48xf32>, vector<8x48xf32> -> vector<8x48xf32>
    %165 = vector.extract_strided_slice %164 {offsets = [0, 32], sizes = [8, 16], strides = [1, 1]} : vector<8x48xf32> to vector<8x16xf32>
    %166 = vector.extract_strided_slice %164 {offsets = [0, 0], sizes = [8, 16], strides = [1, 1]} : vector<8x48xf32> to vector<8x16xf32>
    %c2_i32_107 = arith.constant 2 : i32
    %167 = tpu.dynamic_rotate %166 by %c2_i32_107 dim 0 : vector<8x16xf32>, i32 -> vector<8x16xf32>
    %cst_108 = arith.constant 0.000000e+00 : f32
    %168 = vector.shape_cast %121 : vector<8x1xi1> to vector<8x1xi1>
    %169 = vector.broadcast %168 : vector<8x1xi1> to vector<8x16xi1>
    %170 = vector.broadcast %cst_108 : f32 to vector<8x16xf32>
    %171 = arith.select %169, %170, %167 : vector<8x16xi1>, vector<8x16xf32>
    %172 = arith.addf %165, %171 : vector<8x16xf32>
    %173 = vector.extract_strided_slice %164 {offsets = [0, 16], sizes = [8, 16], strides = [1, 1]} : vector<8x48xf32> to vector<8x16xf32>
    %c1_i32_109 = arith.constant 1 : i32
    %174 = tpu.dynamic_rotate %173 by %c1_i32_109 dim 0 : vector<8x16xf32>, i32 -> vector<8x16xf32>
    %cst_110 = arith.constant 0.000000e+00 : f32
    %175 = vector.shape_cast %119 : vector<8x1xi1> to vector<8x1xi1>
    %176 = vector.broadcast %175 : vector<8x1xi1> to vector<8x16xi1>
    %177 = vector.broadcast %cst_110 : f32 to vector<8x16xf32>
    %178 = arith.select %176, %177, %174 : vector<8x16xi1>, vector<8x16xf32>
    %179 = arith.addf %172, %178 : vector<8x16xf32>
    %c1_111 = arith.constant 1 : index
    %c1_112 = arith.constant 1 : index
    %c0_113 = arith.constant 0 : index
    %c0_114 = arith.constant 0 : index
    %180 = vector.load %arg4[%c1_111, %c1_112, %c0_113, %c0_114] : memref<2x2x1x16xf32, #tpu.memory_space<vmem>>, vector<1x1x1x16xf32>
    %181 = vector.shape_cast %180 : vector<1x1x1x16xf32> to vector<1x16xf32>
    %182 = vector.broadcast %181 : vector<1x16xf32> to vector<8x16xf32>
    %183 = arith.addf %179, %182 : vector<8x16xf32>
    %184 = vector.extract_strided_slice %183 {offsets = [0, 0], sizes = [8, 8], strides = [1, 1]} : vector<8x16xf32> to vector<8x8xf32>
    %cst_115 = arith.constant 0.000000e+00 : f32
    %185 = vector.broadcast %cst_115 : f32 to vector<8x8xf32>
    %186 = arith.maximumf %184, %185 : vector<8x8xf32>
    %187 = vector.extract_strided_slice %183 {offsets = [0, 8], sizes = [8, 8], strides = [1, 1]} : vector<8x16xf32> to vector<8x8xf32>
    %188 = arith.negf %187 : vector<8x8xf32>
    %189 = math.exp %188 : vector<8x8xf32>
    %cst_116 = arith.constant 1.000000e+00 : f32
    %190 = vector.broadcast %cst_116 : f32 to vector<8x8xf32>
    %191 = arith.addf %190, %189 : vector<8x8xf32>
    %192 = arith.divf %190, %191 : vector<8x8xf32>
    %193 = arith.mulf %186, %192 : vector<8x8xf32>
    %c1_117 = arith.constant 1 : index
    %c1_118 = arith.constant 1 : index
    %c0_119 = arith.constant 0 : index
    %c0_120 = arith.constant 0 : index
    %194 = vector.load %arg5[%c1_117, %c1_118, %c0_119, %c0_120] : memref<2x2x8x4xf32, #tpu.memory_space<vmem>>, vector<1x1x8x4xf32>
    %195 = vector.shape_cast %194 : vector<1x1x8x4xf32> to vector<8x4xf32>
    %cst_121 = arith.constant dense<0.000000e+00> : vector<8x4xf32>
    %196 = tpu.matmul %193, %195, %cst_121 {dimension_numbers = #tpu.dot_dimension_numbers<[1], [0], [0], [1], [0, 0, 1, 1], [], []>} : vector<8x8xf32>, vector<8x4xf32>, vector<8x4xf32> -> vector<8x4xf32>
    %c1_122 = arith.constant 1 : index
    %c1_123 = arith.constant 1 : index
    %c0_124 = arith.constant 0 : index
    %c0_125 = arith.constant 0 : index
    %197 = vector.load %arg6[%c1_122, %c1_123, %c0_124, %c0_125] : memref<2x2x1x4xf32, #tpu.memory_space<vmem>>, vector<1x1x1x4xf32>
    %198 = vector.shape_cast %197 : vector<1x1x1x4xf32> to vector<1x4xf32>
    %199 = vector.broadcast %198 : vector<1x4xf32> to vector<8x4xf32>
    %200 = arith.addf %196, %199 : vector<8x4xf32>
    %201 = arith.addf %161, %200 : vector<8x4xf32>
    %c8_126 = arith.constant 8 : index
    %c0_127 = arith.constant 0 : index
    %202 = vector.load %arg14[%c8_126, %c0_127] : memref<24x4xf32, #tpu.memory_space<vmem>>, vector<8x4xf32>
    tpu.vector_store %arg14[%c8_126, %c0_127], %201 {strides = array<i32>} : memref<24x4xf32, #tpu.memory_space<vmem>>, vector<8x4xf32>,
    %c11 = arith.constant 11 : index
    %c0_128 = arith.constant 0 : index
    %203 = tpu.strided_load %arg14[%c11, %c0_128] {strides = array<i32: 4, 1>} : memref<24x4xf32, #tpu.memory_space<vmem>>, vector<2x4xf32>
    %c1_129 = arith.constant 1 : index
    %c0_130 = arith.constant 0 : index
    %c0_131 = arith.constant 0 : index
    %204 = vector.load %arg9[%c1_129, %c0_130, %c0_131] : memref<2x4x8xf32, #tpu.memory_space<vmem>>, vector<1x4x8xf32>
    %205 = vector.shape_cast %204 : vector<1x4x8xf32> to vector<4x8xf32>
    %cst_132 = arith.constant dense<0.000000e+00> : vector<2x8xf32>
    %206 = tpu.matmul %203, %205, %cst_132 {dimension_numbers = #tpu.dot_dimension_numbers<[1], [0], [0], [1], [0, 0, 1, 1], [], []>} : vector<2x4xf32>, vector<4x8xf32>, vector<2x8xf32> -> vector<2x8xf32>
    %c1_133 = arith.constant 1 : index
    %c0_134 = arith.constant 0 : index
    %c0_135 = arith.constant 0 : index
    %207 = vector.load %arg10[%c1_133, %c0_134, %c0_135] : memref<2x1x8xf32, #tpu.memory_space<vmem>>, vector<1x1x8xf32>
    %208 = vector.shape_cast %207 : vector<1x1x8xf32> to vector<1x8xf32>
    %209 = vector.broadcast %208 : vector<1x8xf32> to vector<2x8xf32>
    %210 = arith.addf %206, %209 : vector<2x8xf32>
    %211 = arith.addf %96, %210 : vector<2x8xf32>
    %c8_136 = arith.constant 8 : index
    %c0_137 = arith.constant 0 : index
    %212 = tpu.strided_load %arg14[%c8_136, %c0_137] {strides = array<i32: 2, 1>} : memref<24x4xf32, #tpu.memory_space<vmem>>, vector<4x4xf32>
    %c7_138 = arith.constant 7 : index
    %c0_139 = arith.constant 0 : index
    %213 = tpu.strided_load %arg14[%c7_138, %c0_139] {strides = array<i32: 2, 1>} : memref<24x4xf32, #tpu.memory_space<vmem>>, vector<4x4xf32>
    %c0_140 = arith.constant 0 : index
    %c2 = arith.constant 2 : index
    %214 = vector.load %arg2[%c0_140, %c2] : memref<16x3xi32, #tpu.memory_space<vmem>>, vector<4x1xi32>
    %c1_i32_141 = arith.constant 1 : i32
    %215 = vector.broadcast %c1_i32_141 : i32 to vector<4x1xi32>
    %216 = arith.cmpi slt, %214, %215 : vector<4x1xi32>
    %cst_142 = arith.constant 0.000000e+00 : f32
    %217 = vector.shape_cast %216 : vector<4x1xi1> to vector<4x1xi1>
    %218 = vector.broadcast %217 : vector<4x1xi1> to vector<4x4xi1>
    %219 = vector.broadcast %cst_142 : f32 to vector<4x4xf32>
    %220 = arith.select %218, %219, %213 : vector<4x4xi1>, vector<4x4xf32>
    %c1_143 = arith.constant 1 : index
    %c0_144 = arith.constant 0 : index
    %c0_145 = arith.constant 0 : index
    %221 = vector.load %arg7[%c1_143, %c0_144, %c0_145] : memref<2x4x8xf32, #tpu.memory_space<vmem>>, vector<1x4x8xf32>
    %222 = vector.shape_cast %221 : vector<1x4x8xf32> to vector<4x8xf32>
    %223 = vector.extract_strided_slice %222 {offsets = [0, 0], sizes = [4, 4], strides = [1, 1]} : vector<4x8xf32> to vector<4x4xf32>
    %cst_146 = arith.constant dense<0.000000e+00> : vector<4x4xf32>
    %224 = tpu.matmul %220, %223, %cst_146 {dimension_numbers = #tpu.dot_dimension_numbers<[1], [0], [0], [1], [0, 0, 1, 1], [], []>} : vector<4x4xf32>, vector<4x4xf32>, vector<4x4xf32> -> vector<4x4xf32>
    %225 = vector.extract_strided_slice %222 {offsets = [0, 4], sizes = [4, 4], strides = [1, 1]} : vector<4x8xf32> to vector<4x4xf32>
    %cst_147 = arith.constant dense<0.000000e+00> : vector<4x4xf32>
    %226 = tpu.matmul %212, %225, %cst_147 {dimension_numbers = #tpu.dot_dimension_numbers<[1], [0], [0], [1], [0, 0, 1, 1], [], []>} : vector<4x4xf32>, vector<4x4xf32>, vector<4x4xf32> -> vector<4x4xf32>
    %227 = arith.addf %224, %226 : vector<4x4xf32>
    %c1_148 = arith.constant 1 : index
    %c0_149 = arith.constant 0 : index
    %c0_150 = arith.constant 0 : index
    %228 = vector.load %arg8[%c1_148, %c0_149, %c0_150] : memref<2x1x4xf32, #tpu.memory_space<vmem>>, vector<1x1x4xf32>
    %229 = vector.shape_cast %228 : vector<1x1x4xf32> to vector<1x4xf32>
    %230 = vector.broadcast %229 : vector<1x4xf32> to vector<4x4xf32>
    %231 = arith.addf %227, %230 : vector<4x4xf32>
    %c0_151 = arith.constant 0 : index
    %c0_152 = arith.constant 0 : index
    %232 = vector.load %arg11[%c0_151, %c0_152] : memref<4x8xf32, #tpu.memory_space<vmem>>, vector<4x8xf32>
    %cst_153 = arith.constant dense<0.000000e+00> : vector<4x8xf32>
    %233 = tpu.matmul %231, %232, %cst_153 {dimension_numbers = #tpu.dot_dimension_numbers<[1], [0], [0], [1], [0, 0, 1, 1], [], []>} : vector<4x4xf32>, vector<4x8xf32>, vector<4x8xf32> -> vector<4x8xf32>
    %c0_154 = arith.constant 0 : index
    %c0_155 = arith.constant 0 : index
    %234 = vector.load %arg12[%c0_154, %c0_155] : memref<1x8xf32, #tpu.memory_space<vmem>>, vector<1x8xf32>
    %235 = vector.broadcast %234 : vector<1x8xf32> to vector<4x8xf32>
    %236 = arith.addf %233, %235 : vector<4x8xf32>
    %237 = vector.extract_strided_slice %236 {offsets = [0, 0], sizes = [2, 8], strides = [1, 1]} : vector<4x8xf32> to vector<2x8xf32>
    %238 = vector.extract_strided_slice %211 {offsets = [0, 0], sizes = [1, 8], strides = [1, 1]} : vector<2x8xf32> to vector<1x8xf32>
    %239 = vector.broadcast %238 : vector<1x8xf32> to vector<2x8xf32>
    %240 = arith.addf %237, %239 : vector<2x8xf32>
    %cst_156 = arith.constant 0.000000e+00 : f32
    %241 = vector.broadcast %cst_156 : f32 to vector<2x8xf32>
    %242 = arith.maximumf %240, %241 : vector<2x8xf32>
    %c0_157 = arith.constant 0 : index
    %c0_158 = arith.constant 0 : index
    %243 = vector.load %arg13[%c0_157, %c0_158] : memref<4x8xf32, #tpu.memory_space<vmem>>, vector<2x8xf32>
    tpu.vector_store %arg13[%c0_157, %c0_158], %242 {strides = array<i32>} : memref<4x8xf32, #tpu.memory_space<vmem>>, vector<2x8xf32>,
    %244 = vector.extract_strided_slice %236 {offsets = [2, 0], sizes = [2, 8], strides = [1, 1]} : vector<4x8xf32> to vector<2x8xf32>
    %245 = vector.extract_strided_slice %211 {offsets = [1, 0], sizes = [1, 8], strides = [1, 1]} : vector<2x8xf32> to vector<1x8xf32>
    %246 = vector.broadcast %245 : vector<1x8xf32> to vector<2x8xf32>
    %247 = arith.addf %244, %246 : vector<2x8xf32>
    %cst_159 = arith.constant 0.000000e+00 : f32
    %248 = vector.broadcast %cst_159 : f32 to vector<2x8xf32>
    %249 = arith.maximumf %247, %248 : vector<2x8xf32>
    %c2_160 = arith.constant 2 : index
    %c0_161 = arith.constant 0 : index
    %250 = vector.load %arg13[%c2_160, %c0_161] : memref<4x8xf32, #tpu.memory_space<vmem>>, vector<2x8xf32>
    tpu.vector_store %arg13[%c2_160, %c0_161], %249 {strides = array<i32>} : memref<4x8xf32, #tpu.memory_space<vmem>>, vector<2x8xf32>,
    return
  }
  func.func @transform_0(%arg0: i32) -> (i32, i32) {
    %c0_i32 = arith.constant 0 : i32
    %c0_i32_0 = arith.constant 0 : i32
    return %arg0, %c0_i32 : i32, i32
  }
  func.func @transform_1(%arg0: i32) -> (i32, i32) {
    %c0_i32 = arith.constant 0 : i32
    %c0_i32_0 = arith.constant 0 : i32
    %c0_i32_1 = arith.constant 0 : i32
    return %c0_i32, %c0_i32_0 : i32, i32
  }
  func.func @transform_2(%arg0: i32) -> (i32, i32, i32, i32) {
    %c0_i32 = arith.constant 0 : i32
    %c0_i32_0 = arith.constant 0 : i32
    %c0_i32_1 = arith.constant 0 : i32
    %c0_i32_2 = arith.constant 0 : i32
    %c0_i32_3 = arith.constant 0 : i32
    return %c0_i32, %c0_i32_0, %c0_i32_1, %c0_i32_2 : i32, i32, i32, i32
  }
  func.func @transform_3(%arg0: i32) -> (i32, i32, i32, i32) {
    %c0_i32 = arith.constant 0 : i32
    %c0_i32_0 = arith.constant 0 : i32
    %c0_i32_1 = arith.constant 0 : i32
    %c0_i32_2 = arith.constant 0 : i32
    %c0_i32_3 = arith.constant 0 : i32
    return %c0_i32, %c0_i32_0, %c0_i32_1, %c0_i32_2 : i32, i32, i32, i32
  }
  func.func @transform_4(%arg0: i32) -> (i32, i32, i32, i32) {
    %c0_i32 = arith.constant 0 : i32
    %c0_i32_0 = arith.constant 0 : i32
    %c0_i32_1 = arith.constant 0 : i32
    %c0_i32_2 = arith.constant 0 : i32
    %c0_i32_3 = arith.constant 0 : i32
    return %c0_i32, %c0_i32_0, %c0_i32_1, %c0_i32_2 : i32, i32, i32, i32
  }
  func.func @transform_5(%arg0: i32) -> (i32, i32, i32, i32) {
    %c0_i32 = arith.constant 0 : i32
    %c0_i32_0 = arith.constant 0 : i32
    %c0_i32_1 = arith.constant 0 : i32
    %c0_i32_2 = arith.constant 0 : i32
    %c0_i32_3 = arith.constant 0 : i32
    return %c0_i32, %c0_i32_0, %c0_i32_1, %c0_i32_2 : i32, i32, i32, i32
  }
  func.func @transform_6(%arg0: i32) -> (i32, i32, i32) {
    %c0_i32 = arith.constant 0 : i32
    %c0_i32_0 = arith.constant 0 : i32
    %c0_i32_1 = arith.constant 0 : i32
    %c0_i32_2 = arith.constant 0 : i32
    return %c0_i32, %c0_i32_0, %c0_i32_1 : i32, i32, i32
  }
  func.func @transform_7(%arg0: i32) -> (i32, i32, i32) {
    %c0_i32 = arith.constant 0 : i32
    %c0_i32_0 = arith.constant 0 : i32
    %c0_i32_1 = arith.constant 0 : i32
    %c0_i32_2 = arith.constant 0 : i32
    return %c0_i32, %c0_i32_0, %c0_i32_1 : i32, i32, i32
  }
  func.func @transform_8(%arg0: i32) -> (i32, i32, i32) {
    %c0_i32 = arith.constant 0 : i32
    %c0_i32_0 = arith.constant 0 : i32
    %c0_i32_1 = arith.constant 0 : i32
    %c0_i32_2 = arith.constant 0 : i32
    return %c0_i32, %c0_i32_0, %c0_i32_1 : i32, i32, i32
  }
  func.func @transform_9(%arg0: i32) -> (i32, i32, i32) {
    %c0_i32 = arith.constant 0 : i32
    %c0_i32_0 = arith.constant 0 : i32
    %c0_i32_1 = arith.constant 0 : i32
    %c0_i32_2 = arith.constant 0 : i32
    return %c0_i32, %c0_i32_0, %c0_i32_1 : i32, i32, i32
  }
  func.func @transform_10(%arg0: i32) -> (i32, i32) {
    %c0_i32 = arith.constant 0 : i32
    %c0_i32_0 = arith.constant 0 : i32
    %c0_i32_1 = arith.constant 0 : i32
    return %c0_i32, %c0_i32_0 : i32, i32
  }
  func.func @transform_11(%arg0: i32) -> (i32, i32) {
    %c0_i32 = arith.constant 0 : i32
    %c0_i32_0 = arith.constant 0 : i32
    %c0_i32_1 = arith.constant 0 : i32
    return %c0_i32, %c0_i32_0 : i32, i32
  }
  func.func @transform_12(%arg0: i32) -> (i32, i32) {
    %c0_i32 = arith.constant 0 : i32
    %c0_i32_0 = arith.constant 0 : i32
    return %arg0, %c0_i32 : i32, i32
  }
}

</mosaic_0001>

<llo_original>
// kernel: tpu_custom_call.1
$region0: #{tpu_custom_call.1}
  #allocation0 [shape = 'u32[]', space=smem, size = 0x4, offset = 0x4, fixed_abs, tag = 'smem constant byte address 0x4 - core index']
  #allocation1 [shape = 'u32[144,128]{1,0:T(1,128)}', space=vmem, size = 0x12000, scoped, tag = 'internal scratch']
  %s0 = inlined_call_operand.hbm [shape: f32[8,128], index: 0, kind: input, shape index: {}]
  %s1 = inlined_call_operand.hbm [shape: f32[8,128], index: 1, kind: output, shape index: {}]
  %s2 = sld [smem:[#allocation0]]
  $region18: #{tpu_custom_call.1} parent=0
    _
  %s4 = ssub.s32 1, %s2
  %s5 = scalar_select 0, %s4, %s2
  $region1: #{tpu_custom_call.1} parent=0
    #allocation2 [shape = 'u8[4096]{0}', space=vmem, size = 0x1000, scoped, tag = 'input window, operand 0, single buffered']
    #allocation3 [shape = 's32[1]{0}', space=sflag, size = 0x4, scoped, tag = 'scoped memory for tpu_custom_call.1']
    #allocation4 [shape = 's32[1]{0}', space=sflag, size = 0x4, scoped, tag = 'scoped memory for tpu_custom_call.1']
    #allocation5 [shape = 'u8[4096]{0}', space=vmem, size = 0x1000, scoped, tag = 'output window, operand 0, single buffered']
    %6 = vsyncpa [#allocation3], 0
    %7 = vsyncpa [#allocation4], 0
    // Predicated region
    $region2: #{tpu_custom_call.1} parent=1 // pred_check
      _
    $region3: #{tpu_custom_call.1} parent=1 // pred_check_branch
      %9 = sbr.rel (0) target = $region5
    $region4: #{tpu_custom_call.1} parent=1 // pred_region
      %s11 = ssub.s32 128, 128
      %12 = vsyncadd [#allocation3], %s11
      %s14 = sshll.u32 [#allocation2], 4
      %s15 = int_to_ptr.vmem [resolvable:$true] %s14
      %17 = dma.hbm_to_vmem [thread:$0]  %s0, 128, %s15, [#allocation3]
    $region5: #{tpu_custom_call.1} parent=1 // pred_fallthru
      _
    // Predicated region
    $region6: #{tpu_custom_call.1} parent=1 // pred_check
      _
    $region7: #{tpu_custom_call.1} parent=1 // pred_check_branch
      %19 = sbr.rel (0) target = $region9
    $region8: #{tpu_custom_call.1} parent=1 // pred_region
      %20 = dma.done [#allocation3], 128
    $region9: #{tpu_custom_call.1} parent=1 // pred_fallthru
      _
    %v21 = vld [vmem:[#allocation2] sm:$0xff]
    %v22 = vrot.slane %v21, 7
    %23 = vst [vmem:[#allocation5] sm:$0xff] %v22
    // Predicated region
    $region10: #{tpu_custom_call.1} parent=1 // pred_check
      _
    $region11: #{tpu_custom_call.1} parent=1 // pred_check_branch
      %25 = sbr.rel (0) target = $region13
    $region12: #{tpu_custom_call.1} parent=1 // pred_region
      %s27 = ssub.s32 128, 128
      %28 = vsyncadd [#allocation4], %s27
      %s30 = sshll.u32 [#allocation5], 4
      %s31 = int_to_ptr.vmem [resolvable:$true] %s30
      %33 = dma.vmem_to_hbm [thread:$0]  %s31, 128, %s1, [#allocation4]
    $region13: #{tpu_custom_call.1} parent=1 // pred_fallthru
      _
    // Predicated region
    $region14: #{tpu_custom_call.1} parent=1 // pred_check
      _
    $region15: #{tpu_custom_call.1} parent=1 // pred_check_branch
      %35 = sbr.rel (0) target = $region17
    $region16: #{tpu_custom_call.1} parent=1 // pred_region
      %36 = dma.done [#allocation4], 128
    $region17: #{tpu_custom_call.1} parent=1 // pred_fallthru
      _
    %37 = vsyncpa [#allocation3], 1
    %38 = vsyncpa [#allocation4], 1

// kernel: net_forward.1
$region0: #{net_forward.1}
  #allocation0 [shape = 'u32[]', space=smem, size = 0x4, offset = 0x4, fixed_abs, tag = 'smem constant byte address 0x4 - core index']
  #allocation1 [shape = 'u32[144,128]{1,0:T(1,128)}', space=vmem, size = 0x12000, scoped, tag = 'internal scratch']
  #allocation2 [shape = 'f32[24,4]{1,0:T(8,128)}', space=vmem, size = 0x3000, scoped, tag = 'scratch operand']
  %s0 = inlined_call_operand.vmem [shape: f32[16,4], index: 0, kind: input, shape index: {}]
  %s1 = inlined_call_operand.vmem [shape: s32[16,3], index: 1, kind: input, shape index: {}]
  %s2 = inlined_call_operand.vmem [shape: f32[2,2,4,48], index: 2, kind: input, shape index: {}]
  %s3 = inlined_call_operand.vmem [shape: f32[2,2,1,16], index: 3, kind: input, shape index: {}]
  %s4 = inlined_call_operand.vmem [shape: f32[2,2,8,4], index: 4, kind: input, shape index: {}]
  %s5 = inlined_call_operand.vmem [shape: f32[2,2,1,4], index: 5, kind: input, shape index: {}]
  %s6 = inlined_call_operand.vmem [shape: f32[2,4,8], index: 6, kind: input, shape index: {}]
  %s7 = inlined_call_operand.vmem [shape: f32[2,1,4], index: 7, kind: input, shape index: {}]
  %s8 = inlined_call_operand.vmem [shape: f32[2,4,8], index: 8, kind: input, shape index: {}]
  %s9 = inlined_call_operand.vmem [shape: f32[2,1,8], index: 9, kind: input, shape index: {}]
  %s10 = inlined_call_operand.vmem [shape: f32[4,8], index: 10, kind: input, shape index: {}]
  %s11 = inlined_call_operand.vmem [shape: f32[1,8], index: 11, kind: input, shape index: {}]
  %s12 = inlined_call_operand.hbm [shape: f32[4,8], index: 12, kind: output, shape index: {}]
  %s13 = sld [smem:[#allocation0]]
  $region58: #{net_forward.1} parent=0
    _
  %s15 = ssub.s32 1, %s13
  %s16 = scalar_select 0, %s15, %s13
  $region1: #{net_forward.1} parent=0
    #allocation3 [shape = 'u8[2048]{0}', space=vmem, size = 0x800, scoped, tag = 'output window, operand 0, single buffered']
    #allocation4 [shape = 's32[1]{0}', space=sflag, size = 0x4, scoped, tag = 'scoped memory for net_forward.1']
    %17 = vsyncpa [#allocation4], 0
    // Predicated region
    $region2: #{net_forward.1} parent=1 // pred_check
      _
    $region3: #{net_forward.1} parent=1 // pred_check_branch
      %19 = sbr.rel (0) target = $region5
    $region4: #{net_forward.1} parent=1 // pred_region
      _
    $region5: #{net_forward.1} parent=1 // pred_fallthru
      _
    // Predicated region
    $region6: #{net_forward.1} parent=1 // pred_check
      _
    $region7: #{net_forward.1} parent=1 // pred_check_branch
      %21 = sbr.rel (0) target = $region9
    $region8: #{net_forward.1} parent=1 // pred_region
      _
    $region9: #{net_forward.1} parent=1 // pred_fallthru
      _
    // Predicated region
    $region10: #{net_forward.1} parent=1 // pred_check
      _
    $region11: #{net_forward.1} parent=1 // pred_check_branch
      %23 = sbr.rel (0) target = $region13
    $region12: #{net_forward.1} parent=1 // pred_region
      _
    $region13: #{net_forward.1} parent=1 // pred_fallthru
      _
    // Predicated region
    $region14: #{net_forward.1} parent=1 // pred_check
      _
    $region15: #{net_forward.1} parent=1 // pred_check_branch
      %25 = sbr.rel (0) target = $region17
    $region16: #{net_forward.1} parent=1 // pred_region
      _
    $region17: #{net_forward.1} parent=1 // pred_fallthru
      _
    // Predicated region
    $region18: #{net_forward.1} parent=1 // pred_check
      _
    $region19: #{net_forward.1} parent=1 // pred_check_branch
      %27 = sbr.rel (0) target = $region21
    $region20: #{net_forward.1} parent=1 // pred_region
      _
    $region21: #{net_forward.1} parent=1 // pred_fallthru
      _
    // Predicated region
    $region22: #{net_forward.1} parent=1 // pred_check
      _
    $region23: #{net_forward.1} parent=1 // pred_check_branch
      %29 = sbr.rel (0) target = $region25
    $region24: #{net_forward.1} parent=1 // pred_region
      _
    $region25: #{net_forward.1} parent=1 // pred_fallthru
      _
    // Predicated region
    $region26: #{net_forward.1} parent=1 // pred_check
      _
    $region27: #{net_forward.1} parent=1 // pred_check_branch
      %31 = sbr.rel (0) target = $region29
    $region28: #{net_forward.1} parent=1 // pred_region
      _
    $region29: #{net_forward.1} parent=1 // pred_fallthru
      _
    // Predicated region
    $region30: #{net_forward.1} parent=1 // pred_check
      _
    $region31: #{net_forward.1} parent=1 // pred_check_branch
      %33 = sbr.rel (0) target = $region33
    $region32: #{net_forward.1} parent=1 // pred_region
      _
    $region33: #{net_forward.1} parent=1 // pred_fallthru
      _
    // Predicated region
    $region34: #{net_forward.1} parent=1 // pred_check
      _
    $region35: #{net_forward.1} parent=1 // pred_check_branch
      %35 = sbr.rel (0) target = $region37
    $region36: #{net_forward.1} parent=1 // pred_region
      _
    $region37: #{net_forward.1} parent=1 // pred_fallthru
      _
    // Predicated region
    $region38: #{net_forward.1} parent=1 // pred_check
      _
    $region39: #{net_forward.1} parent=1 // pred_check_branch
      %37 = sbr.rel (0) target = $region41
    $region40: #{net_forward.1} parent=1 // pred_region
      _
    $region41: #{net_forward.1} parent=1 // pred_fallthru
      _
    // Predicated region
    $region42: #{net_forward.1} parent=1 // pred_check
      _
    $region43: #{net_forward.1} parent=1 // pred_check_branch
      %39 = sbr.rel (0) target = $region45
    $region44: #{net_forward.1} parent=1 // pred_region
      _
    $region45: #{net_forward.1} parent=1 // pred_fallthru
      _
    // Predicated region
    $region46: #{net_forward.1} parent=1 // pred_check
      _
    $region47: #{net_forward.1} parent=1 // pred_check_branch
      %41 = sbr.rel (0) target = $region49
    $region48: #{net_forward.1} parent=1 // pred_region
      _
    $region49: #{net_forward.1} parent=1 // pred_fallthru
      _
    %v42 = vld [vmem:[%s0] sm:$0xff]
    %v43 = vld [vmem:[%s0 + $0x8] sm:$0xff]
    %v44 = vld [vmem:[%s1] sm:$0xff]
    %v45 = vld [vmem:[%s1 + $0x8] sm:$0xff]
    %vm46 = vcmp.lt.s32.totalorder %v44, 1
    %vm47 = vcmp.lt.s32.totalorder %v45, 1
    %vm48 = vcmp.lt.s32.totalorder %v44, 2
    %vm49 = vcmp.lt.s32.totalorder %v45, 2
    %v50 = vld [vmem:[%s2] sm:$0xf]
    %vm51 = vcmask 31744
    %v53 = vsel %vm51, %v42, 0
    %v56 = vsel %vm51, %v43, 0
    %vm58 = vcmask 1043456
    %v60 = vsel %vm58, %v50, 0
    %62 = vmatprep.subr.mxu0 0.0
    %63 = vmatpush1.msra.mxu0 %v60
    %64 = vmatprep.subr.mxu0 0.0
    %65 = vmatpush1.msra.mxu0 0.0
    %66 = vmatprep.subr.mxu0 0.0
    %67 = vmatpush1.msra.mxu0 0.0
    %68 = vmatprep.subr.mxu0 0.0
    %69 = vmatpush1.msra.mxu0 0.0
    %70 = vmatprep.subr.mxu0 0.0
    %71 = vmatpush1.msra.mxu0 0.0
    %72 = vmatprep.subr.mxu0 0.0
    %73 = vmatpush1.msra.mxu0 0.0
    %74 = vmatprep.subr.mxu0 0.0
    %75 = vmatpush1.msra.mxu0 0.0
    %76 = vmatprep.subr.mxu0 0.0
    %77 = vmatpush1.msra.mxu0 0.0
    %78 = vmatprep.subr.mxu0 0.0
    %79 = vmatpush1.msra.mxu0 0.0
    %80 = vmatprep.subr.mxu0 0.0
    %81 = vmatpush1.msra.mxu0 0.0
    %82 = vmatprep.subr.mxu0 0.0
    %83 = vmatpush1.msra.mxu0 0.0
    %84 = vmatprep.subr.mxu0 0.0
    %85 = vmatpush1.msra.mxu0 0.0
    %86 = vmatprep.subr.mxu0 0.0
    %87 = vmatpush1.msra.mxu0 0.0
    %88 = vmatprep.subr.mxu0 0.0
    %89 = vmatpush1.msra.mxu0 0.0
    %90 = vmatprep.subr.mxu0 0.0
    %91 = vmatpush1.msra.mxu0 0.0
    %92 = vmatprep.subr.mxu0 0.0
    %93 = vmatpush1.msra.mxu0 0.0
    %94 = vmatprep.subr.mxu0 0.0
    %95 = vmatpush1.msra.mxu0 0.0
    %96 = vmatprep.subr.mxu0 0.0
    %97 = vmatpush1.msra.mxu0 0.0
    %98 = vmatprep.subr.mxu0 0.0
    %99 = vmatpush1.msra.mxu0 0.0
    %100 = vmatprep.subr.mxu0 0.0
    %101 = vmatpush1.msra.mxu0 0.0
    %102 = vmatprep.subr.mxu0 0.0
    %103 = vmatpush1.msra.mxu0 0.0
    %104 = vmatprep.subr.mxu0 0.0
    %105 = vmatpush1.msra.mxu0 0.0
    %106 = vmatprep.subr.mxu0 0.0
    %107 = vmatpush1.msra.mxu0 0.0
    %108 = vmatprep.subr.mxu0 0.0
    %109 = vmatpush1.msra.mxu0 0.0
    %110 = vmatprep.subr.mxu0 0.0
    %111 = vmatpush1.msra.mxu0 0.0
    %112 = vmatprep.subr.mxu0 0.0
    %113 = vmatpush1.msra.mxu0 0.0
    %114 = vmatprep.subr.mxu0 0.0
    %115 = vmatpush1.msra.mxu0 0.0
    %116 = vmatprep.subr.mxu0 0.0
    %117 = vmatpush1.msra.mxu0 0.0
    %118 = vmatprep.subr.mxu0 0.0
    %119 = vmatpush1.msra.mxu0 0.0
    %120 = vmatprep.subr.mxu0 0.0
    %121 = vmatpush1.msra.mxu0 0.0
    %122 = vmatprep.subr.mxu0 0.0
    %123 = vmatpush1.msra.mxu0 0.0
    %124 = vmatprep.subr.mxu0 0.0
    %125 = vmatpush1.msra.mxu0 0.0
    %126 = vmatprep.mubr.f32.mxu0 0.0
    %127 = vmatmul.mubr.f32.gmra.mrb[0].mxu0 %v53
    %v128 = vpop.f32.mrb[0].mxu0
    %v129 = vadd.f32 0.0, %v128
    %v130 = vpop.f32.mrb[0].mxu0
    %131 = vmatprep.mubr.f32.mxu0 0.0
    %132 = vmatmul.mubr.f32.gmra.mrb[0].mxu0 %v56
    %v133 = vpop.f32.mrb[0].mxu0
    %v134 = vadd.f32 0.0, %v133
    %v135 = vpop.f32.mrb[0].mxu0
    %136 = vdwg.mxu0
    %v137 = vrot.slane %v129, 6
    %v138 = vrot.slane %v134, 6
    %v139 = vlaneseq
    %v140 = vshrl.u32 %v139, 7
    %vm141 = vcmp.lt.s32.totalorder %v140, 2
    %v142 = vsel %vm141, %v137, %v138
    %v143 = vsel %vm141, %v138, %v137
    %v144 = vsel %vm48, 1, 0
    %v145 = vsel %vm49, 1, 0
    %146 = vset.pattern.permute.xlu0 0
    %147 = vperm.xlu0 %146, %v144
    %v148 = vpop.permute.xlu0 %147
    %149 = vset.pattern.permute.xlu0 0
    %150 = vperm.xlu0 %149, %v145
    %v151 = vpop.permute.xlu0 %150
    %vm152 = vcmp.eq.s32.totalorder %v148, 1
    %vm153 = vcmp.eq.s32.totalorder %v151, 1
    %v154 = vsel %vm152, 0.0, %v143
    %v155 = vsel %vm153, 0.0, %v142
    %158 = vrot.lane.b32.xlu0 %v154, 32
    %v159 = vpop.permute.xlu0 %158
    %160 = vrot.lane.b32.xlu0 %v155, 32
    %v161 = vpop.permute.xlu0 %160
    %v164 = vadd.f32 %v129, %v159
    %v165 = vadd.f32 %v134, %v161
    %168 = vrot.lane.b32.xlu0 %v129, 112
    %v169 = vpop.permute.xlu0 %168
    %170 = vrot.lane.b32.xlu0 %v134, 112
    %v171 = vpop.permute.xlu0 %170
    %v174 = vrot.slane %v169, 7
    %v175 = vrot.slane %v171, 7
    %vm176 = vcmp.lt.s32.totalorder %v140, 1
    %v177 = vsel %vm176, %v174, %v175
    %v178 = vsel %vm176, %v175, %v174
    %v179 = vsel %vm46, 1, 0
    %v180 = vsel %vm47, 1, 0
    %181 = vset.pattern.permute.xlu0 0
    %182 = vperm.xlu0 %181, %v179
    %v183 = vpop.permute.xlu0 %182
    %184 = vset.pattern.permute.xlu0 0
    %185 = vperm.xlu0 %184, %v180
    %v186 = vpop.permute.xlu0 %185
    %vm187 = vcmp.eq.s32.totalorder %v183, 1
    %vm188 = vcmp.eq.s32.totalorder %v186, 1
    %v189 = vsel %vm187, 0.0, %v178
    %v190 = vsel %vm188, 0.0, %v177
    %193 = vrot.lane.b32.xlu0 %v189, 32
    %v194 = vpop.permute.xlu0 %193
    %195 = vrot.lane.b32.xlu0 %v190, 32
    %v196 = vpop.permute.xlu0 %195
    %v199 = vadd.f32 %v164, %v194
    %v200 = vadd.f32 %v165, %v196
    %v201 = vld [vmem:[%s3] sm:$0x1]
    %v203 = vlaneseq
    %v204 = vshrl.u32 %v203, 7
    %v205 = vsub.s32 0, %v204
    %v206 = vrot.slane %v201, %v205
    %207 = vrot.lane.b32.xlu0 %v206, 32
    %v208 = vpop.permute.xlu0 %207
    %v210 = vadd.f32 %v199, %v208
    %v211 = vadd.f32 %v200, %v208
    %v212 = vmax.f32 %v210, 0.0
    %v213 = vmax.f32 %v211, 0.0
    %v214 = vxor.u32 %v210, 2147483648
    %v215 = vxor.u32 %v211, 2147483648
    %v216 = vmul.f32 %v214, 1.442695
    %v217 = vpow.pop %v216
    %v218 = vmul.f32 %v215, 1.442695
    %v219 = vpow.pop %v218
    %v220 = vadd.f32 %v217, 1.0
    %v221 = vadd.f32 %v219, 1.0
    %v222 = vrcp.pop %v220
    %v223 = vmul.f32 1.0, %v222
    %v224 = vrcp.pop %v221
    %v225 = vmul.f32 1.0, %v224
    %228 = vrot.lane.b32.xlu0 %v223, 120
    %v229 = vpop.permute.xlu0 %228
    %230 = vrot.lane.b32.xlu0 %v225, 120
    %v231 = vpop.permute.xlu0 %230
    %v234 = vmul.f32 %v212, %v229
    %v235 = vmul.f32 %v213, %v231
    %v236 = vld [vmem:[%s4] sm:$0xff]
    %v237 = vld [vmem:[%s5] sm:$0x1]
    %v239 = vlaneseq
    %v240 = vshrl.u32 %v239, 7
    %v241 = vsub.s32 0, %v240
    %v242 = vrot.slane %v237, %v241
    %246 = vrot.lane.b32.xlu0 %v234, 96
    %v247 = vpop.permute.xlu0 %246
    %248 = vrot.lane.b32.xlu0 %v235, 96
    %v249 = vpop.permute.xlu0 %248
    %vm250 = vcmask 64512
    %v251 = vsel %vm250, %v247, 0
    %v253 = vsel %vm250, %v249, 0
    %255 = vmatprep.subr.mxu0 0.0
    %256 = vmatpush1.msra.mxu0 %v236
    %257 = vmatprep.subr.mxu0 0.0
    %258 = vmatpush1.msra.mxu0 0.0
    %259 = vmatprep.subr.mxu0 0.0
    %260 = vmatpush1.msra.mxu0 0.0
    %261 = vmatprep.subr.mxu0 0.0
    %262 = vmatpush1.msra.mxu0 0.0
    %263 = vmatprep.subr.mxu0 0.0
    %264 = vmatpush1.msra.mxu0 0.0
    %265 = vmatprep.subr.mxu0 0.0
    %266 = vmatpush1.msra.mxu0 0.0
    %267 = vmatprep.subr.mxu0 0.0
    %268 = vmatpush1.msra.mxu0 0.0
    %269 = vmatprep.subr.mxu0 0.0
    %270 = vmatpush1.msra.mxu0 0.0
    %271 = vmatprep.subr.mxu0 0.0
    %272 = vmatpush1.msra.mxu0 0.0
    %273 = vmatprep.subr.mxu0 0.0
    %274 = vmatpush1.msra.mxu0 0.0
    %275 = vmatprep.subr.mxu0 0.0
    %276 = vmatpush1.msra.mxu0 0.0
    %277 = vmatprep.subr.mxu0 0.0
    %278 = vmatpush1.msra.mxu0 0.0
    %279 = vmatprep.subr.mxu0 0.0
    %280 = vmatpush1.msra.mxu0 0.0
    %281 = vmatprep.subr.mxu0 0.0
    %282 = vmatpush1.msra.mxu0 0.0
    %283 = vmatprep.subr.mxu0 0.0
    %284 = vmatpush1.msra.mxu0 0.0
    %285 = vmatprep.subr.mxu0 0.0
    %286 = vmatpush1.msra.mxu0 0.0
    %287 = vmatprep.subr.mxu0 0.0
    %288 = vmatpush1.msra.mxu0 0.0
    %289 = vmatprep.subr.mxu0 0.0
    %290 = vmatpush1.msra.mxu0 0.0
    %291 = vmatprep.subr.mxu0 0.0
    %292 = vmatpush1.msra.mxu0 0.0
    %293 = vmatprep.subr.mxu0 0.0
    %294 = vmatpush1.msra.mxu0 0.0
    %295 = vmatprep.subr.mxu0 0.0
    %296 = vmatpush1.msra.mxu0 0.0
    %297 = vmatprep.subr.mxu0 0.0
    %298 = vmatpush1.msra.mxu0 0.0
    %299 = vmatprep.subr.mxu0 0.0
    %300 = vmatpush1.msra.mxu0 0.0
    %301 = vmatprep.subr.mxu0 0.0
    %302 = vmatpush1.msra.mxu0 0.0
    %303 = vmatprep.subr.mxu0 0.0
    %304 = vmatpush1.msra.mxu0 0.0
    %305 = vmatprep.subr.mxu0 0.0
    %306 = vmatpush1.msra.mxu0 0.0
    %307 = vmatprep.subr.mxu0 0.0
    %308 = vmatpush1.msra.mxu0 0.0
    %309 = vmatprep.subr.mxu0 0.0
    %310 = vmatpush1.msra.mxu0 0.0
    %311 = vmatprep.subr.mxu0 0.0
    %312 = vmatpush1.msra.mxu0 0.0
    %313 = vmatprep.subr.mxu0 0.0
    %314 = vmatpush1.msra.mxu0 0.0
    %315 = vmatprep.subr.mxu0 0.0
    %316 = vmatpush1.msra.mxu0 0.0
    %317 = vmatprep.subr.mxu0 0.0
    %318 = vmatpush1.msra.mxu0 0.0
    %319 = vmatprep.mubr.f32.mxu0 0.0
    %320 = vmatmul.mubr.f32.gmra.mrb[0].mxu0 %v251
    %v321 = vpop.f32.mrb[0].mxu0
    %v322 = vadd.f32 %v242, %v321
    %v323 = vpop.f32.mrb[0].mxu0
    %324 = vmatprep.mubr.f32.mxu0 0.0
    %325 = vmatmul.mubr.f32.gmra.mrb[0].mxu0 %v253
    %v326 = vpop.f32.mrb[0].mxu0
    %v327 = vadd.f32 %v242, %v326
    %v328 = vpop.f32.mrb[0].mxu0
    %329 = vdwg.mxu0
    %v330 = vadd.f32 %v42, %v322
    %v331 = vadd.f32 %v43, %v327
    %s332 = scalar_lea.vmem %s2, 4
    %v333 = vld [vmem:[%s332] sm:$0xf]
    %v335 = vsel %vm51, %v330, 0
    %v338 = vsel %vm51, %v331, 0
    %v341 = vsel %vm58, %v333, 0
    %343 = vmatprep.subr.mxu0 0.0
    %344 = vmatpush1.msra.mxu0 %v341
    %345 = vmatprep.subr.mxu0 0.0
    %346 = vmatpush1.msra.mxu0 0.0
    %347 = vmatprep.subr.mxu0 0.0
    %348 = vmatpush1.msra.mxu0 0.0
    %349 = vmatprep.subr.mxu0 0.0
    %350 = vmatpush1.msra.mxu0 0.0
    %351 = vmatprep.subr.mxu0 0.0
    %352 = vmatpush1.msra.mxu0 0.0
    %353 = vmatprep.subr.mxu0 0.0
    %354 = vmatpush1.msra.mxu0 0.0
    %355 = vmatprep.subr.mxu0 0.0
    %356 = vmatpush1.msra.mxu0 0.0
    %357 = vmatprep.subr.mxu0 0.0
    %358 = vmatpush1.msra.mxu0 0.0
    %359 = vmatprep.subr.mxu0 0.0
    %360 = vmatpush1.msra.mxu0 0.0
    %361 = vmatprep.subr.mxu0 0.0
    %362 = vmatpush1.msra.mxu0 0.0
    %363 = vmatprep.subr.mxu0 0.0
    %364 = vmatpush1.msra.mxu0 0.0
    %365 = vmatprep.subr.mxu0 0.0
    %366 = vmatpush1.msra.mxu0 0.0
    %367 = vmatprep.subr.mxu0 0.0
    %368 = vmatpush1.msra.mxu0 0.0
    %369 = vmatprep.subr.mxu0 0.0
    %370 = vmatpush1.msra.mxu0 0.0
    %371 = vmatprep.subr.mxu0 0.0
    %372 = vmatpush1.msra.mxu0 0.0
    %373 = vmatprep.subr.mxu0 0.0
    %374 = vmatpush1.msra.mxu0 0.0
    %375 = vmatprep.subr.mxu0 0.0
    %376 = vmatpush1.msra.mxu0 0.0
    %377 = vmatprep.subr.mxu0 0.0
    %378 = vmatpush1.msra.mxu0 0.0
    %379 = vmatprep.subr.mxu0 0.0
    %380 = vmatpush1.msra.mxu0 0.0
    %381 = vmatprep.subr.mxu0 0.0
    %382 = vmatpush1.msra.mxu0 0.0
    %383 = vmatprep.subr.mxu0 0.0
    %384 = vmatpush1.msra.mxu0 0.0
    %385 = vmatprep.subr.mxu0 0.0
    %386 = vmatpush1.msra.mxu0 0.0
    %387 = vmatprep.subr.mxu0 0.0
    %388 = vmatpush1.msra.mxu0 0.0
    %389 = vmatprep.subr.mxu0 0.0
    %390 = vmatpush1.msra.mxu0 0.0
    %391 = vmatprep.subr.mxu0 0.0
    %392 = vmatpush1.msra.mxu0 0.0
    %393 = vmatprep.subr.mxu0 0.0
    %394 = vmatpush1.msra.mxu0 0.0
    %395 = vmatprep.subr.mxu0 0.0
    %396 = vmatpush1.msra.mxu0 0.0
    %397 = vmatprep.subr.mxu0 0.0
    %398 = vmatpush1.msra.mxu0 0.0
    %399 = vmatprep.subr.mxu0 0.0
    %400 = vmatpush1.msra.mxu0 0.0
    %401 = vmatprep.subr.mxu0 0.0
    %402 = vmatpush1.msra.mxu0 0.0
    %403 = vmatprep.subr.mxu0 0.0
    %404 = vmatpush1.msra.mxu0 0.0
    %405 = vmatprep.subr.mxu0 0.0
    %406 = vmatpush1.msra.mxu0 0.0
    %407 = vmatprep.mubr.f32.mxu0 0.0
    %408 = vmatmul.mubr.f32.gmra.mrb[0].mxu0 %v335
    %v409 = vpop.f32.mrb[0].mxu0
    %v410 = vadd.f32 0.0, %v409
    %v411 = vpop.f32.mrb[0].mxu0
    %412 = vmatprep.mubr.f32.mxu0 0.0
    %413 = vmatmul.mubr.f32.gmra.mrb[0].mxu0 %v338
    %v414 = vpop.f32.mrb[0].mxu0
    %v415 = vadd.f32 0.0, %v414
    %v416 = vpop.f32.mrb[0].mxu0
    %417 = vdwg.mxu0
    %v418 = vrot.slane %v410, 6
    %v419 = vrot.slane %v415, 6
    %v420 = vsel %vm141, %v418, %v419
    %v421 = vsel %vm141, %v419, %v418
    %v422 = vsel %vm152, 0.0, %v421
    %v423 = vsel %vm153, 0.0, %v420
    %426 = vrot.lane.b32.xlu0 %v422, 32
    %v427 = vpop.permute.xlu0 %426
    %428 = vrot.lane.b32.xlu0 %v423, 32
    %v429 = vpop.permute.xlu0 %428
    %v432 = vadd.f32 %v410, %v427
    %v433 = vadd.f32 %v415, %v429
    %436 = vrot.lane.b32.xlu0 %v410, 112
    %v437 = vpop.permute.xlu0 %436
    %438 = vrot.lane.b32.xlu0 %v415, 112
    %v439 = vpop.permute.xlu0 %438
    %v442 = vrot.slane %v437, 7
    %v443 = vrot.slane %v439, 7
    %v444 = vsel %vm176, %v442, %v443
    %v445 = vsel %vm176, %v443, %v442
    %v446 = vsel %vm187, 0.0, %v445
    %v447 = vsel %vm188, 0.0, %v444
    %450 = vrot.lane.b32.xlu0 %v446, 32
    %v451 = vpop.permute.xlu0 %450
    %452 = vrot.lane.b32.xlu0 %v447, 32
    %v453 = vpop.permute.xlu0 %452
    %v456 = vadd.f32 %v432, %v451
    %v457 = vadd.f32 %v433, %v453
    %s458 = scalar_lea.vmem %s3, 1
    %v459 = vld [vmem:[%s458] sm:$0x1]
    %v461 = vlaneseq
    %v462 = vshrl.u32 %v461, 7
    %v463 = vsub.s32 0, %v462
    %v464 = vrot.slane %v459, %v463
    %465 = vrot.lane.b32.xlu0 %v464, 32
    %v466 = vpop.permute.xlu0 %465
    %v468 = vadd.f32 %v456, %v466
    %v469 = vadd.f32 %v457, %v466
    %v470 = vmax.f32 %v468, 0.0
    %v471 = vmax.f32 %v469, 0.0
    %v472 = vxor.u32 %v468, 2147483648
    %v473 = vxor.u32 %v469, 2147483648
    %v474 = vmul.f32 %v472, 1.442695
    %v475 = vpow.pop %v474
    %v476 = vmul.f32 %v473, 1.442695
    %v477 = vpow.pop %v476
    %v478 = vadd.f32 %v475, 1.0
    %v479 = vadd.f32 %v477, 1.0
    %v480 = vrcp.pop %v478
    %v481 = vmul.f32 1.0, %v480
    %v482 = vrcp.pop %v479
    %v483 = vmul.f32 1.0, %v482
    %486 = vrot.lane.b32.xlu0 %v481, 120
    %v487 = vpop.permute.xlu0 %486
    %488 = vrot.lane.b32.xlu0 %v483, 120
    %v489 = vpop.permute.xlu0 %488
    %v492 = vmul.f32 %v470, %v487
    %v493 = vmul.f32 %v471, %v489
    %s494 = scalar_lea.vmem %s4, 8
    %v495 = vld [vmem:[%s494] sm:$0xff]
    %s496 = scalar_lea.vmem %s5, 1
    %v497 = vld [vmem:[%s496] sm:$0x1]
    %v499 = vlaneseq
    %v500 = vshrl.u32 %v499, 7
    %v501 = vsub.s32 0, %v500
    %v502 = vrot.slane %v497, %v501
    %506 = vrot.lane.b32.xlu0 %v492, 96
    %v507 = vpop.permute.xlu0 %506
    %508 = vrot.lane.b32.xlu0 %v493, 96
    %v509 = vpop.permute.xlu0 %508
    %v510 = vsel %vm250, %v507, 0
    %v512 = vsel %vm250, %v509, 0
    %514 = vmatprep.subr.mxu0 0.0
    %515 = vmatpush1.msra.mxu0 %v495
    %516 = vmatprep.subr.mxu0 0.0
    %517 = vmatpush1.msra.mxu0 0.0
    %518 = vmatprep.subr.mxu0 0.0
    %519 = vmatpush1.msra.mxu0 0.0
    %520 = vmatprep.subr.mxu0 0.0
    %521 = vmatpush1.msra.mxu0 0.0
    %522 = vmatprep.subr.mxu0 0.0
    %523 = vmatpush1.msra.mxu0 0.0
    %524 = vmatprep.subr.mxu0 0.0
    %525 = vmatpush1.msra.mxu0 0.0
    %526 = vmatprep.subr.mxu0 0.0
    %527 = vmatpush1.msra.mxu0 0.0
    %528 = vmatprep.subr.mxu0 0.0
    %529 = vmatpush1.msra.mxu0 0.0
    %530 = vmatprep.subr.mxu0 0.0
    %531 = vmatpush1.msra.mxu0 0.0
    %532 = vmatprep.subr.mxu0 0.0
    %533 = vmatpush1.msra.mxu0 0.0
    %534 = vmatprep.subr.mxu0 0.0
    %535 = vmatpush1.msra.mxu0 0.0
    %536 = vmatprep.subr.mxu0 0.0
    %537 = vmatpush1.msra.mxu0 0.0
    %538 = vmatprep.subr.mxu0 0.0
    %539 = vmatpush1.msra.mxu0 0.0
    %540 = vmatprep.subr.mxu0 0.0
    %541 = vmatpush1.msra.mxu0 0.0
    %542 = vmatprep.subr.mxu0 0.0
    %543 = vmatpush1.msra.mxu0 0.0
    %544 = vmatprep.subr.mxu0 0.0
    %545 = vmatpush1.msra.mxu0 0.0
    %546 = vmatprep.subr.mxu0 0.0
    %547 = vmatpush1.msra.mxu0 0.0
    %548 = vmatprep.subr.mxu0 0.0
    %549 = vmatpush1.msra.mxu0 0.0
    %550 = vmatprep.subr.mxu0 0.0
    %551 = vmatpush1.msra.mxu0 0.0
    %552 = vmatprep.subr.mxu0 0.0
    %553 = vmatpush1.msra.mxu0 0.0
    %554 = vmatprep.subr.mxu0 0.0
    %555 = vmatpush1.msra.mxu0 0.0
    %556 = vmatprep.subr.mxu0 0.0
    %557 = vmatpush1.msra.mxu0 0.0
    %558 = vmatprep.subr.mxu0 0.0
    %559 = vmatpush1.msra.mxu0 0.0
    %560 = vmatprep.subr.mxu0 0.0
    %561 = vmatpush1.msra.mxu0 0.0
    %562 = vmatprep.subr.mxu0 0.0
    %563 = vmatpush1.msra.mxu0 0.0
    %564 = vmatprep.subr.mxu0 0.0
    %565 = vmatpush1.msra.mxu0 0.0
    %566 = vmatprep.subr.mxu0 0.0
    %567 = vmatpush1.msra.mxu0 0.0
    %568 = vmatprep.subr.mxu0 0.0
    %569 = vmatpush1.msra.mxu0 0.0
    %570 = vmatprep.subr.mxu0 0.0
    %571 = vmatpush1.msra.mxu0 0.0
    %572 = vmatprep.subr.mxu0 0.0
    %573 = vmatpush1.msra.mxu0 0.0
    %574 = vmatprep.subr.mxu0 0.0
    %575 = vmatpush1.msra.mxu0 0.0
    %576 = vmatprep.subr.mxu0 0.0
    %577 = vmatpush1.msra.mxu0 0.0
    %578 = vmatprep.mubr.f32.mxu0 0.0
    %579 = vmatmul.mubr.f32.gmra.mrb[0].mxu0 %v510
    %v580 = vpop.f32.mrb[0].mxu0
    %v581 = vadd.f32 %v502, %v580
    %v582 = vpop.f32.mrb[0].mxu0
    %583 = vmatprep.mubr.f32.mxu0 0.0
    %584 = vmatmul.mubr.f32.gmra.mrb[0].mxu0 %v512
    %v585 = vpop.f32.mrb[0].mxu0
    %v586 = vadd.f32 %v502, %v585
    %v587 = vpop.f32.mrb[0].mxu0
    %588 = vdwg.mxu0
    %v589 = vadd.f32 %v330, %v581
    %v590 = vadd.f32 %v331, %v586
    %591 = vst.msk [vmem:[#allocation2 + $0x8] sm:$0xff] %vm51, %v589
    %592 = vst.msk [vmem:[#allocation2 + $0x10] sm:$0xff] %vm51, %v590
    %s593 = scalar_lea.vmem [#allocation2], 15
    %v594 = vld [vmem:[%s593] ss:$8 sm:$0x3]
    %v595 = vld [vmem:[%s8] sm:$0xf]
    %v596 = vld [vmem:[%s9] sm:$0x1]
    %v598 = vlaneseq
    %v599 = vshrl.u32 %v598, 7
    %v600 = vsub.s32 0, %v599
    %v601 = vrot.slane %v596, %v600
    %v604 = vsel %vm51, %v594, 0
    %v607 = vsel %vm58, %v595, 0
    %609 = vmatprep.subr.mxu0 0.0
    %610 = vmatpush1.msra.mxu0 %v607
    %611 = vmatprep.subr.mxu0 0.0
    %612 = vmatpush1.msra.mxu0 0.0
    %613 = vmatprep.subr.mxu0 0.0
    %614 = vmatpush1.msra.mxu0 0.0
    %615 = vmatprep.subr.mxu0 0.0
    %616 = vmatpush1.msra.mxu0 0.0
    %617 = vmatprep.subr.mxu0 0.0
    %618 = vmatpush1.msra.mxu0 0.0
    %619 = vmatprep.subr.mxu0 0.0
    %620 = vmatpush1.msra.mxu0 0.0
    %621 = vmatprep.subr.mxu0 0.0
    %622 = vmatpush1.msra.mxu0 0.0
    %623 = vmatprep.subr.mxu0 0.0
    %624 = vmatpush1.msra.mxu0 0.0
    %625 = vmatprep.subr.mxu0 0.0
    %626 = vmatpush1.msra.mxu0 0.0
    %627 = vmatprep.subr.mxu0 0.0
    %628 = vmatpush1.msra.mxu0 0.0
    %629 = vmatprep.subr.mxu0 0.0
    %630 = vmatpush1.msra.mxu0 0.0
    %631 = vmatprep.subr.mxu0 0.0
    %632 = vmatpush1.msra.mxu0 0.0
    %633 = vmatprep.subr.mxu0 0.0
    %634 = vmatpush1.msra.mxu0 0.0
    %635 = vmatprep.subr.mxu0 0.0
    %636 = vmatpush1.msra.mxu0 0.0
    %637 = vmatprep.subr.mxu0 0.0
    %638 = vmatpush1.msra.mxu0 0.0
    %639 = vmatprep.subr.mxu0 0.0
    %640 = vmatpush1.msra.mxu0 0.0
    %641 = vmatprep.subr.mxu0 0.0
    %642 = vmatpush1.msra.mxu0 0.0
    %643 = vmatprep.subr.mxu0 0.0
    %644 = vmatpush1.msra.mxu0 0.0
    %645 = vmatprep.subr.mxu0 0.0
    %646 = vmatpush1.msra.mxu0 0.0
    %647 = vmatprep.subr.mxu0 0.0
    %648 = vmatpush1.msra.mxu0 0.0
    %649 = vmatprep.subr.mxu0 0.0
    %650 = vmatpush1.msra.mxu0 0.0
    %651 = vmatprep.subr.mxu0 0.0
    %652 = vmatpush1.msra.mxu0 0.0
    %653 = vmatprep.subr.mxu0 0.0
    %654 = vmatpush1.msra.mxu0 0.0
    %655 = vmatprep.subr.mxu0 0.0
    %656 = vmatpush1.msra.mxu0 0.0
    %657 = vmatprep.subr.mxu0 0.0
    %658 = vmatpush1.msra.mxu0 0.0
    %659 = vmatprep.subr.mxu0 0.0
    %660 = vmatpush1.msra.mxu0 0.0
    %661 = vmatprep.subr.mxu0 0.0
    %662 = vmatpush1.msra.mxu0 0.0
    %663 = vmatprep.subr.mxu0 0.0
    %664 = vmatpush1.msra.mxu0 0.0
    %665 = vmatprep.subr.mxu0 0.0
    %666 = vmatpush1.msra.mxu0 0.0
    %667 = vmatprep.subr.mxu0 0.0
    %668 = vmatpush1.msra.mxu0 0.0
    %669 = vmatprep.subr.mxu0 0.0
    %670 = vmatpush1.msra.mxu0 0.0
    %671 = vmatprep.subr.mxu0 0.0
    %672 = vmatpush1.msra.mxu0 0.0
    %673 = vmatprep.mubr.f32.mxu0 0.0
    %674 = vmatmul.mubr.f32.gmra.mrb[0].mxu0 %v604
    %v675 = vpop.f32.mrb[0].mxu0
    %v676 = vadd.f32 %v601, %v675
    %v677 = vpop.f32.mrb[0].mxu0
    %678 = vdwg.mxu0
    %v679 = vadd.f32 %v676, 0.0
    %s680 = scalar_lea.vmem [#allocation2], 8
    %v681 = vld [vmem:[%s680] ss:$2 sm:$0xff]
    %s682 = scalar_lea.vmem [#allocation2], 7
    %v683 = vld [vmem:[%s682] ss:$2 sm:$0xff]
    %v684 = vld [vmem:[%s1] sm:$0xff]
    %vm685 = vcmp.lt.s32.totalorder %v684, 1
    %v686 = vsel %vm685, 1, 0
    %687 = vset.pattern.permute.xlu0 1
    %688 = vperm.xlu0 %687, %v686
    %v689 = vpop.permute.xlu0 %688
    %vm690 = vcmp.eq.s32.totalorder %v689, 1
    %v691 = vsel %vm690, 0.0, %v683
    %v692 = vld [vmem:[%s6] sm:$0xf]
    %694 = vrot.lane.b32.xlu0 %v692, 124
    %v695 = vpop.permute.xlu0 %694
    %v697 = vsel %vm51, %v681, 0
    %v699 = vsel %vm58, %v695, 0
    %701 = vmatprep.subr.mxu0 0.0
    %702 = vmatpush1.msra.mxu0 %v699
    %703 = vmatprep.subr.mxu0 0.0
    %704 = vmatpush1.msra.mxu0 0.0
    %705 = vmatprep.subr.mxu0 0.0
    %706 = vmatpush1.msra.mxu0 0.0
    %707 = vmatprep.subr.mxu0 0.0
    %708 = vmatpush1.msra.mxu0 0.0
    %709 = vmatprep.subr.mxu0 0.0
    %710 = vmatpush1.msra.mxu0 0.0
    %711 = vmatprep.subr.mxu0 0.0
    %712 = vmatpush1.msra.mxu0 0.0
    %713 = vmatprep.subr.mxu0 0.0
    %714 = vmatpush1.msra.mxu0 0.0
    %715 = vmatprep.subr.mxu0 0.0
    %716 = vmatpush1.msra.mxu0 0.0
    %717 = vmatprep.subr.mxu0 0.0
    %718 = vmatpush1.msra.mxu0 0.0
    %719 = vmatprep.subr.mxu0 0.0
    %720 = vmatpush1.msra.mxu0 0.0
    %721 = vmatprep.subr.mxu0 0.0
    %722 = vmatpush1.msra.mxu0 0.0
    %723 = vmatprep.subr.mxu0 0.0
    %724 = vmatpush1.msra.mxu0 0.0
    %725 = vmatprep.subr.mxu0 0.0
    %726 = vmatpush1.msra.mxu0 0.0
    %727 = vmatprep.subr.mxu0 0.0
    %728 = vmatpush1.msra.mxu0 0.0
    %729 = vmatprep.subr.mxu0 0.0
    %730 = vmatpush1.msra.mxu0 0.0
    %731 = vmatprep.subr.mxu0 0.0
    %732 = vmatpush1.msra.mxu0 0.0
    %733 = vmatprep.subr.mxu0 0.0
    %734 = vmatpush1.msra.mxu0 0.0
    %735 = vmatprep.subr.mxu0 0.0
    %736 = vmatpush1.msra.mxu0 0.0
    %737 = vmatprep.subr.mxu0 0.0
    %738 = vmatpush1.msra.mxu0 0.0
    %739 = vmatprep.subr.mxu0 0.0
    %740 = vmatpush1.msra.mxu0 0.0
    %741 = vmatprep.subr.mxu0 0.0
    %742 = vmatpush1.msra.mxu0 0.0
    %743 = vmatprep.subr.mxu0 0.0
    %744 = vmatpush1.msra.mxu0 0.0
    %745 = vmatprep.subr.mxu0 0.0
    %746 = vmatpush1.msra.mxu0 0.0
    %747 = vmatprep.subr.mxu0 0.0
    %748 = vmatpush1.msra.mxu0 0.0
    %749 = vmatprep.subr.mxu0 0.0
    %750 = vmatpush1.msra.mxu0 0.0
    %751 = vmatprep.subr.mxu0 0.0
    %752 = vmatpush1.msra.mxu0 0.0
    %753 = vmatprep.subr.mxu0 0.0
    %754 = vmatpush1.msra.mxu0 0.0
    %755 = vmatprep.subr.mxu0 0.0
    %756 = vmatpush1.msra.mxu0 0.0
    %757 = vmatprep.subr.mxu0 0.0
    %758 = vmatpush1.msra.mxu0 0.0
    %759 = vmatprep.subr.mxu0 0.0
    %760 = vmatpush1.msra.mxu0 0.0
    %761 = vmatprep.subr.mxu0 0.0
    %762 = vmatpush1.msra.mxu0 0.0
    %763 = vmatprep.subr.mxu0 0.0
    %764 = vmatpush1.msra.mxu0 0.0
    %765 = vmatprep.mubr.f32.mxu0 0.0
    %766 = vmatmul.mubr.f32.gmra.mrb[0].mxu0 %v697
    %v767 = vpop.f32.mrb[0].mxu0
    %v768 = vadd.f32 0.0, %v767
    %v769 = vpop.f32.mrb[0].mxu0
    %770 = vdwg.mxu0
    %v772 = vsel %vm51, %v691, 0
    %v774 = vsel %vm58, %v692, 0
    %776 = vmatprep.subr.mxu0 0.0
    %777 = vmatpush1.msra.mxu0 %v774
    %778 = vmatprep.subr.mxu0 0.0
    %779 = vmatpush1.msra.mxu0 0.0
    %780 = vmatprep.subr.mxu0 0.0
    %781 = vmatpush1.msra.mxu0 0.0
    %782 = vmatprep.subr.mxu0 0.0
    %783 = vmatpush1.msra.mxu0 0.0
    %784 = vmatprep.subr.mxu0 0.0
    %785 = vmatpush1.msra.mxu0 0.0
    %786 = vmatprep.subr.mxu0 0.0
    %787 = vmatpush1.msra.mxu0 0.0
    %788 = vmatprep.subr.mxu0 0.0
    %789 = vmatpush1.msra.mxu0 0.0
    %790 = vmatprep.subr.mxu0 0.0
    %791 = vmatpush1.msra.mxu0 0.0
    %792 = vmatprep.subr.mxu0 0.0
    %793 = vmatpush1.msra.mxu0 0.0
    %794 = vmatprep.subr.mxu0 0.0
    %795 = vmatpush1.msra.mxu0 0.0
    %796 = vmatprep.subr.mxu0 0.0
    %797 = vmatpush1.msra.mxu0 0.0
    %798 = vmatprep.subr.mxu0 0.0
    %799 = vmatpush1.msra.mxu0 0.0
    %800 = vmatprep.subr.mxu0 0.0
    %801 = vmatpush1.msra.mxu0 0.0
    %802 = vmatprep.subr.mxu0 0.0
    %803 = vmatpush1.msra.mxu0 0.0
    %804 = vmatprep.subr.mxu0 0.0
    %805 = vmatpush1.msra.mxu0 0.0
    %806 = vmatprep.subr.mxu0 0.0
    %807 = vmatpush1.msra.mxu0 0.0
    %808 = vmatprep.subr.mxu0 0.0
    %809 = vmatpush1.msra.mxu0 0.0
    %810 = vmatprep.subr.mxu0 0.0
    %811 = vmatpush1.msra.mxu0 0.0
    %812 = vmatprep.subr.mxu0 0.0
    %813 = vmatpush1.msra.mxu0 0.0
    %814 = vmatprep.subr.mxu0 0.0
    %815 = vmatpush1.msra.mxu0 0.0
    %816 = vmatprep.subr.mxu0 0.0
    %817 = vmatpush1.msra.mxu0 0.0
    %818 = vmatprep.subr.mxu0 0.0
    %819 = vmatpush1.msra.mxu0 0.0
    %820 = vmatprep.subr.mxu0 0.0
    %821 = vmatpush1.msra.mxu0 0.0
    %822 = vmatprep.subr.mxu0 0.0
    %823 = vmatpush1.msra.mxu0 0.0
    %824 = vmatprep.subr.mxu0 0.0
    %825 = vmatpush1.msra.mxu0 0.0
    %826 = vmatprep.subr.mxu0 0.0
    %827 = vmatpush1.msra.mxu0 0.0
    %828 = vmatprep.subr.mxu0 0.0
    %829 = vmatpush1.msra.mxu0 0.0
    %830 = vmatprep.subr.mxu0 0.0
    %831 = vmatpush1.msra.mxu0 0.0
    %832 = vmatprep.subr.mxu0 0.0
    %833 = vmatpush1.msra.mxu0 0.0
    %834 = vmatprep.subr.mxu0 0.0
    %835 = vmatpush1.msra.mxu0 0.0
    %836 = vmatprep.subr.mxu0 0.0
    %837 = vmatpush1.msra.mxu0 0.0
    %838 = vmatprep.subr.mxu0 0.0
    %839 = vmatpush1.msra.mxu0 0.0
    %840 = vmatprep.mubr.f32.mxu0 0.0
    %841 = vmatmul.mubr.f32.gmra.mrb[0].mxu0 %v772
    %v842 = vpop.f32.mrb[0].mxu0
    %v843 = vadd.f32 %v768, %v842
    %v844 = vpop.f32.mrb[0].mxu0
    %845 = vdwg.mxu0
    %v846 = vld [vmem:[%s7] sm:$0x1]
    %v848 = vlaneseq
    %v849 = vshrl.u32 %v848, 7
    %v850 = vsub.s32 0, %v849
    %v851 = vrot.slane %v846, %v850
    %v853 = vadd.f32 %v843, %v851
    %vm854 = vcmp.lt.s32.totalorder %v684, 2
    %s855 = scalar_lea.vmem %s2, 8
    %v856 = vld [vmem:[%s855] sm:$0xf]
    %v858 = vsel %vm51, %v853, 0
    %v861 = vsel %vm58, %v856, 0
    %863 = vmatprep.subr.mxu0 0.0
    %864 = vmatpush1.msra.mxu0 %v861
    %865 = vmatprep.subr.mxu0 0.0
    %866 = vmatpush1.msra.mxu0 0.0
    %867 = vmatprep.subr.mxu0 0.0
    %868 = vmatpush1.msra.mxu0 0.0
    %869 = vmatprep.subr.mxu0 0.0
    %870 = vmatpush1.msra.mxu0 0.0
    %871 = vmatprep.subr.mxu0 0.0
    %872 = vmatpush1.msra.mxu0 0.0
    %873 = vmatprep.subr.mxu0 0.0
    %874 = vmatpush1.msra.mxu0 0.0
    %875 = vmatprep.subr.mxu0 0.0
    %876 = vmatpush1.msra.mxu0 0.0
    %877 = vmatprep.subr.mxu0 0.0
    %878 = vmatpush1.msra.mxu0 0.0
    %879 = vmatprep.subr.mxu0 0.0
    %880 = vmatpush1.msra.mxu0 0.0
    %881 = vmatprep.subr.mxu0 0.0
    %882 = vmatpush1.msra.mxu0 0.0
    %883 = vmatprep.subr.mxu0 0.0
    %884 = vmatpush1.msra.mxu0 0.0
    %885 = vmatprep.subr.mxu0 0.0
    %886 = vmatpush1.msra.mxu0 0.0
    %887 = vmatprep.subr.mxu0 0.0
    %888 = vmatpush1.msra.mxu0 0.0
    %889 = vmatprep.subr.mxu0 0.0
    %890 = vmatpush1.msra.mxu0 0.0
    %891 = vmatprep.subr.mxu0 0.0
    %892 = vmatpush1.msra.mxu0 0.0
    %893 = vmatprep.subr.mxu0 0.0
    %894 = vmatpush1.msra.mxu0 0.0
    %895 = vmatprep.subr.mxu0 0.0
    %896 = vmatpush1.msra.mxu0 0.0
    %897 = vmatprep.subr.mxu0 0.0
    %898 = vmatpush1.msra.mxu0 0.0
    %899 = vmatprep.subr.mxu0 0.0
    %900 = vmatpush1.msra.mxu0 0.0
    %901 = vmatprep.subr.mxu0 0.0
    %902 = vmatpush1.msra.mxu0 0.0
    %903 = vmatprep.subr.mxu0 0.0
    %904 = vmatpush1.msra.mxu0 0.0
    %905 = vmatprep.subr.mxu0 0.0
    %906 = vmatpush1.msra.mxu0 0.0
    %907 = vmatprep.subr.mxu0 0.0
    %908 = vmatpush1.msra.mxu0 0.0
    %909 = vmatprep.subr.mxu0 0.0
    %910 = vmatpush1.msra.mxu0 0.0
    %911 = vmatprep.subr.mxu0 0.0
    %912 = vmatpush1.msra.mxu0 0.0
    %913 = vmatprep.subr.mxu0 0.0
    %914 = vmatpush1.msra.mxu0 0.0
    %915 = vmatprep.subr.mxu0 0.0
    %916 = vmatpush1.msra.mxu0 0.0
    %917 = vmatprep.subr.mxu0 0.0
    %918 = vmatpush1.msra.mxu0 0.0
    %919 = vmatprep.subr.mxu0 0.0
    %920 = vmatpush1.msra.mxu0 0.0
    %921 = vmatprep.subr.mxu0 0.0
    %922 = vmatpush1.msra.mxu0 0.0
    %923 = vmatprep.subr.mxu0 0.0
    %924 = vmatpush1.msra.mxu0 0.0
    %925 = vmatprep.subr.mxu0 0.0
    %926 = vmatpush1.msra.mxu0 0.0
    %927 = vmatprep.mubr.f32.mxu0 0.0
    %928 = vmatmul.mubr.f32.gmra.mrb[0].mxu0 %v858
    %v929 = vpop.f32.mrb[0].mxu0
    %v930 = vadd.f32 0.0, %v929
    %v931 = vpop.f32.mrb[0].mxu0
    %932 = vdwg.mxu0
    %v933 = vrot.slane %v930, 6
    %v934 = vsel %vm854, 1, 0
    %935 = vset.pattern.permute.xlu0 1
    %936 = vperm.xlu0 %935, %v934
    %v937 = vpop.permute.xlu0 %936
    %vm938 = vcmp.eq.s32.totalorder %v937, 1
    %v939 = vsel %vm938, 0.0, %v933
    %941 = vrot.lane.b32.xlu0 %v939, 32
    %v942 = vpop.permute.xlu0 %941
    %v944 = vadd.f32 %v930, %v942
    %946 = vrot.lane.b32.xlu0 %v930, 112
    %v947 = vpop.permute.xlu0 %946
    %v949 = vrot.slane %v947, 7
    %v950 = vsel %vm690, 0.0, %v949
    %952 = vrot.lane.b32.xlu0 %v950, 32
    %v953 = vpop.permute.xlu0 %952
    %v955 = vadd.f32 %v944, %v953
    %s956 = scalar_lea.vmem %s3, 2
    %v957 = vld [vmem:[%s956] sm:$0x1]
    %v959 = vlaneseq
    %v960 = vshrl.u32 %v959, 7
    %v961 = vsub.s32 0, %v960
    %v962 = vrot.slane %v957, %v961
    %963 = vrot.lane.b32.xlu0 %v962, 32
    %v964 = vpop.permute.xlu0 %963
    %v966 = vadd.f32 %v955, %v964
    %v967 = vmax.f32 %v966, 0.0
    %v968 = vxor.u32 %v966, 2147483648
    %v969 = vmul.f32 %v968, 1.442695
    %v970 = vpow.pop %v969
    %v971 = vadd.f32 %v970, 1.0
    %v972 = vrcp.pop %v971
    %v973 = vmul.f32 1.0, %v972
    %975 = vrot.lane.b32.xlu0 %v973, 120
    %v976 = vpop.permute.xlu0 %975
    %v978 = vmul.f32 %v967, %v976
    %s979 = scalar_lea.vmem %s4, 16
    %v980 = vld [vmem:[%s979] sm:$0xff]
    %s981 = scalar_lea.vmem %s5, 2
    %v982 = vld [vmem:[%s981] sm:$0x1]
    %v984 = vlaneseq
    %v985 = vshrl.u32 %v984, 7
    %v986 = vsub.s32 0, %v985
    %v987 = vrot.slane %v982, %v986
    %990 = vrot.lane.b32.xlu0 %v978, 96
    %v991 = vpop.permute.xlu0 %990
    %v992 = vsel %vm250, %v991, 0
    %994 = vmatprep.subr.mxu0 0.0
    %995 = vmatpush1.msra.mxu0 %v980
    %996 = vmatprep.subr.mxu0 0.0
    %997 = vmatpush1.msra.mxu0 0.0
    %998 = vmatprep.subr.mxu0 0.0
    %999 = vmatpush1.msra.mxu0 0.0
    %1000 = vmatprep.subr.mxu0 0.0
    %1001 = vmatpush1.msra.mxu0 0.0
    %1002 = vmatprep.subr.mxu0 0.0
    %1003 = vmatpush1.msra.mxu0 0.0
    %1004 = vmatprep.subr.mxu0 0.0
    %1005 = vmatpush1.msra.mxu0 0.0
    %1006 = vmatprep.subr.mxu0 0.0
    %1007 = vmatpush1.msra.mxu0 0.0
    %1008 = vmatprep.subr.mxu0 0.0
    %1009 = vmatpush1.msra.mxu0 0.0
    %1010 = vmatprep.subr.mxu0 0.0
    %1011 = vmatpush1.msra.mxu0 0.0
    %1012 = vmatprep.subr.mxu0 0.0
    %1013 = vmatpush1.msra.mxu0 0.0
    %1014 = vmatprep.subr.mxu0 0.0
    %1015 = vmatpush1.msra.mxu0 0.0
    %1016 = vmatprep.subr.mxu0 0.0
    %1017 = vmatpush1.msra.mxu0 0.0
    %1018 = vmatprep.subr.mxu0 0.0
    %1019 = vmatpush1.msra.mxu0 0.0
    %1020 = vmatprep.subr.mxu0 0.0
    %1021 = vmatpush1.msra.mxu0 0.0
    %1022 = vmatprep.subr.mxu0 0.0
    %1023 = vmatpush1.msra.mxu0 0.0
    %1024 = vmatprep.subr.mxu0 0.0
    %1025 = vmatpush1.msra.mxu0 0.0
    %1026 = vmatprep.subr.mxu0 0.0
    %1027 = vmatpush1.msra.mxu0 0.0
    %1028 = vmatprep.subr.mxu0 0.0
    %1029 = vmatpush1.msra.mxu0 0.0
    %1030 = vmatprep.subr.mxu0 0.0
    %1031 = vmatpush1.msra.mxu0 0.0
    %1032 = vmatprep.subr.mxu0 0.0
    %1033 = vmatpush1.msra.mxu0 0.0
    %1034 = vmatprep.subr.mxu0 0.0
    %1035 = vmatpush1.msra.mxu0 0.0
    %1036 = vmatprep.subr.mxu0 0.0
    %1037 = vmatpush1.msra.mxu0 0.0
    %1038 = vmatprep.subr.mxu0 0.0
    %1039 = vmatpush1.msra.mxu0 0.0
    %1040 = vmatprep.subr.mxu0 0.0
    %1041 = vmatpush1.msra.mxu0 0.0
    %1042 = vmatprep.subr.mxu0 0.0
    %1043 = vmatpush1.msra.mxu0 0.0
    %1044 = vmatprep.subr.mxu0 0.0
    %1045 = vmatpush1.msra.mxu0 0.0
    %1046 = vmatprep.subr.mxu0 0.0
    %1047 = vmatpush1.msra.mxu0 0.0
    %1048 = vmatprep.subr.mxu0 0.0
    %1049 = vmatpush1.msra.mxu0 0.0
    %1050 = vmatprep.subr.mxu0 0.0
    %1051 = vmatpush1.msra.mxu0 0.0
    %1052 = vmatprep.subr.mxu0 0.0
    %1053 = vmatpush1.msra.mxu0 0.0
    %1054 = vmatprep.subr.mxu0 0.0
    %1055 = vmatpush1.msra.mxu0 0.0
    %1056 = vmatprep.subr.mxu0 0.0
    %1057 = vmatpush1.msra.mxu0 0.0
    %1058 = vmatprep.mubr.f32.mxu0 0.0
    %1059 = vmatmul.mubr.f32.gmra.mrb[0].mxu0 %v992
    %v1060 = vpop.f32.mrb[0].mxu0
    %v1061 = vadd.f32 %v987, %v1060
    %v1062 = vpop.f32.mrb[0].mxu0
    %1063 = vdwg.mxu0
    %v1064 = vadd.f32 %v853, %v1061
    %s1065 = scalar_lea.vmem %s2, 12
    %v1066 = vld [vmem:[%s1065] sm:$0xf]
    %v1068 = vsel %vm51, %v1064, 0
    %v1071 = vsel %vm58, %v1066, 0
    %1073 = vmatprep.subr.mxu0 0.0
    %1074 = vmatpush1.msra.mxu0 %v1071
    %1075 = vmatprep.subr.mxu0 0.0
    %1076 = vmatpush1.msra.mxu0 0.0
    %1077 = vmatprep.subr.mxu0 0.0
    %1078 = vmatpush1.msra.mxu0 0.0
    %1079 = vmatprep.subr.mxu0 0.0
    %1080 = vmatpush1.msra.mxu0 0.0
    %1081 = vmatprep.subr.mxu0 0.0
    %1082 = vmatpush1.msra.mxu0 0.0
    %1083 = vmatprep.subr.mxu0 0.0
    %1084 = vmatpush1.msra.mxu0 0.0
    %1085 = vmatprep.subr.mxu0 0.0
    %1086 = vmatpush1.msra.mxu0 0.0
    %1087 = vmatprep.subr.mxu0 0.0
    %1088 = vmatpush1.msra.mxu0 0.0
    %1089 = vmatprep.subr.mxu0 0.0
    %1090 = vmatpush1.msra.mxu0 0.0
    %1091 = vmatprep.subr.mxu0 0.0
    %1092 = vmatpush1.msra.mxu0 0.0
    %1093 = vmatprep.subr.mxu0 0.0
    %1094 = vmatpush1.msra.mxu0 0.0
    %1095 = vmatprep.subr.mxu0 0.0
    %1096 = vmatpush1.msra.mxu0 0.0
    %1097 = vmatprep.subr.mxu0 0.0
    %1098 = vmatpush1.msra.mxu0 0.0
    %1099 = vmatprep.subr.mxu0 0.0
    %1100 = vmatpush1.msra.mxu0 0.0
    %1101 = vmatprep.subr.mxu0 0.0
    %1102 = vmatpush1.msra.mxu0 0.0
    %1103 = vmatprep.subr.mxu0 0.0
    %1104 = vmatpush1.msra.mxu0 0.0
    %1105 = vmatprep.subr.mxu0 0.0
    %1106 = vmatpush1.msra.mxu0 0.0
    %1107 = vmatprep.subr.mxu0 0.0
    %1108 = vmatpush1.msra.mxu0 0.0
    %1109 = vmatprep.subr.mxu0 0.0
    %1110 = vmatpush1.msra.mxu0 0.0
    %1111 = vmatprep.subr.mxu0 0.0
    %1112 = vmatpush1.msra.mxu0 0.0
    %1113 = vmatprep.subr.mxu0 0.0
    %1114 = vmatpush1.msra.mxu0 0.0
    %1115 = vmatprep.subr.mxu0 0.0
    %1116 = vmatpush1.msra.mxu0 0.0
    %1117 = vmatprep.subr.mxu0 0.0
    %1118 = vmatpush1.msra.mxu0 0.0
    %1119 = vmatprep.subr.mxu0 0.0
    %1120 = vmatpush1.msra.mxu0 0.0
    %1121 = vmatprep.subr.mxu0 0.0
    %1122 = vmatpush1.msra.mxu0 0.0
    %1123 = vmatprep.subr.mxu0 0.0
    %1124 = vmatpush1.msra.mxu0 0.0
    %1125 = vmatprep.subr.mxu0 0.0
    %1126 = vmatpush1.msra.mxu0 0.0
    %1127 = vmatprep.subr.mxu0 0.0
    %1128 = vmatpush1.msra.mxu0 0.0
    %1129 = vmatprep.subr.mxu0 0.0
    %1130 = vmatpush1.msra.mxu0 0.0
    %1131 = vmatprep.subr.mxu0 0.0
    %1132 = vmatpush1.msra.mxu0 0.0
    %1133 = vmatprep.subr.mxu0 0.0
    %1134 = vmatpush1.msra.mxu0 0.0
    %1135 = vmatprep.subr.mxu0 0.0
    %1136 = vmatpush1.msra.mxu0 0.0
    %1137 = vmatprep.mubr.f32.mxu0 0.0
    %1138 = vmatmul.mubr.f32.gmra.mrb[0].mxu0 %v1068
    %v1139 = vpop.f32.mrb[0].mxu0
    %v1140 = vadd.f32 0.0, %v1139
    %v1141 = vpop.f32.mrb[0].mxu0
    %1142 = vdwg.mxu0
    %v1143 = vrot.slane %v1140, 6
    %v1144 = vsel %vm938, 0.0, %v1143
    %1146 = vrot.lane.b32.xlu0 %v1144, 32
    %v1147 = vpop.permute.xlu0 %1146
    %v1149 = vadd.f32 %v1140, %v1147
    %1151 = vrot.lane.b32.xlu0 %v1140, 112
    %v1152 = vpop.permute.xlu0 %1151
    %v1154 = vrot.slane %v1152, 7
    %v1155 = vsel %vm690, 0.0, %v1154
    %1157 = vrot.lane.b32.xlu0 %v1155, 32
    %v1158 = vpop.permute.xlu0 %1157
    %v1160 = vadd.f32 %v1149, %v1158
    %s1161 = scalar_lea.vmem %s3, 3
    %v1162 = vld [vmem:[%s1161] sm:$0x1]
    %v1164 = vlaneseq
    %v1165 = vshrl.u32 %v1164, 7
    %v1166 = vsub.s32 0, %v1165
    %v1167 = vrot.slane %v1162, %v1166
    %1168 = vrot.lane.b32.xlu0 %v1167, 32
    %v1169 = vpop.permute.xlu0 %1168
    %v1171 = vadd.f32 %v1160, %v1169
    %v1172 = vmax.f32 %v1171, 0.0
    %v1173 = vxor.u32 %v1171, 2147483648
    %v1174 = vmul.f32 %v1173, 1.442695
    %v1175 = vpow.pop %v1174
    %v1176 = vadd.f32 %v1175, 1.0
    %v1177 = vrcp.pop %v1176
    %v1178 = vmul.f32 1.0, %v1177
    %1180 = vrot.lane.b32.xlu0 %v1178, 120
    %v1181 = vpop.permute.xlu0 %1180
    %v1183 = vmul.f32 %v1172, %v1181
    %s1184 = scalar_lea.vmem %s4, 24
    %v1185 = vld [vmem:[%s1184] sm:$0xff]
    %s1186 = scalar_lea.vmem %s5, 3
    %v1187 = vld [vmem:[%s1186] sm:$0x1]
    %v1189 = vlaneseq
    %v1190 = vshrl.u32 %v1189, 7
    %v1191 = vsub.s32 0, %v1190
    %v1192 = vrot.slane %v1187, %v1191
    %1195 = vrot.lane.b32.xlu0 %v1183, 96
    %v1196 = vpop.permute.xlu0 %1195
    %v1197 = vsel %vm250, %v1196, 0
    %1199 = vmatprep.subr.mxu0 0.0
    %1200 = vmatpush1.msra.mxu0 %v1185
    %1201 = vmatprep.subr.mxu0 0.0
    %1202 = vmatpush1.msra.mxu0 0.0
    %1203 = vmatprep.subr.mxu0 0.0
    %1204 = vmatpush1.msra.mxu0 0.0
    %1205 = vmatprep.subr.mxu0 0.0
    %1206 = vmatpush1.msra.mxu0 0.0
    %1207 = vmatprep.subr.mxu0 0.0
    %1208 = vmatpush1.msra.mxu0 0.0
    %1209 = vmatprep.subr.mxu0 0.0
    %1210 = vmatpush1.msra.mxu0 0.0
    %1211 = vmatprep.subr.mxu0 0.0
    %1212 = vmatpush1.msra.mxu0 0.0
    %1213 = vmatprep.subr.mxu0 0.0
    %1214 = vmatpush1.msra.mxu0 0.0
    %1215 = vmatprep.subr.mxu0 0.0
    %1216 = vmatpush1.msra.mxu0 0.0
    %1217 = vmatprep.subr.mxu0 0.0
    %1218 = vmatpush1.msra.mxu0 0.0
    %1219 = vmatprep.subr.mxu0 0.0
    %1220 = vmatpush1.msra.mxu0 0.0
    %1221 = vmatprep.subr.mxu0 0.0
    %1222 = vmatpush1.msra.mxu0 0.0
    %1223 = vmatprep.subr.mxu0 0.0
    %1224 = vmatpush1.msra.mxu0 0.0
    %1225 = vmatprep.subr.mxu0 0.0
    %1226 = vmatpush1.msra.mxu0 0.0
    %1227 = vmatprep.subr.mxu0 0.0
    %1228 = vmatpush1.msra.mxu0 0.0
    %1229 = vmatprep.subr.mxu0 0.0
    %1230 = vmatpush1.msra.mxu0 0.0
    %1231 = vmatprep.subr.mxu0 0.0
    %1232 = vmatpush1.msra.mxu0 0.0
    %1233 = vmatprep.subr.mxu0 0.0
    %1234 = vmatpush1.msra.mxu0 0.0
    %1235 = vmatprep.subr.mxu0 0.0
    %1236 = vmatpush1.msra.mxu0 0.0
    %1237 = vmatprep.subr.mxu0 0.0
    %1238 = vmatpush1.msra.mxu0 0.0
    %1239 = vmatprep.subr.mxu0 0.0
    %1240 = vmatpush1.msra.mxu0 0.0
    %1241 = vmatprep.subr.mxu0 0.0
    %1242 = vmatpush1.msra.mxu0 0.0
    %1243 = vmatprep.subr.mxu0 0.0
    %1244 = vmatpush1.msra.mxu0 0.0
    %1245 = vmatprep.subr.mxu0 0.0
    %1246 = vmatpush1.msra.mxu0 0.0
    %1247 = vmatprep.subr.mxu0 0.0
    %1248 = vmatpush1.msra.mxu0 0.0
    %1249 = vmatprep.subr.mxu0 0.0
    %1250 = vmatpush1.msra.mxu0 0.0
    %1251 = vmatprep.subr.mxu0 0.0
    %1252 = vmatpush1.msra.mxu0 0.0
    %1253 = vmatprep.subr.mxu0 0.0
    %1254 = vmatpush1.msra.mxu0 0.0
    %1255 = vmatprep.subr.mxu0 0.0
    %1256 = vmatpush1.msra.mxu0 0.0
    %1257 = vmatprep.subr.mxu0 0.0
    %1258 = vmatpush1.msra.mxu0 0.0
    %1259 = vmatprep.subr.mxu0 0.0
    %1260 = vmatpush1.msra.mxu0 0.0
    %1261 = vmatprep.subr.mxu0 0.0
    %1262 = vmatpush1.msra.mxu0 0.0
    %1263 = vmatprep.mubr.f32.mxu0 0.0
    %1264 = vmatmul.mubr.f32.gmra.mrb[0].mxu0 %v1197
    %v1265 = vpop.f32.mrb[0].mxu0
    %v1266 = vadd.f32 %v1192, %v1265
    %v1267 = vpop.f32.mrb[0].mxu0
    %1268 = vdwg.mxu0
    %v1269 = vadd.f32 %v1064, %v1266
    %1270 = vst.msk [vmem:[#allocation2 + $0x8] sm:$0xff] %vm51, %v1269
    %s1271 = scalar_lea.vmem [#allocation2], 11
    %v1272 = vld [vmem:[%s1271] ss:$4 sm:$0x3]
    %s1273 = scalar_lea.vmem %s8, 4
    %v1274 = vld [vmem:[%s1273] sm:$0xf]
    %s1275 = scalar_lea.vmem %s9, 1
    %v1276 = vld [vmem:[%s1275] sm:$0x1]
    %v1278 = vlaneseq
    %v1279 = vshrl.u32 %v1278, 7
    %v1280 = vsub.s32 0, %v1279
    %v1281 = vrot.slane %v1276, %v1280
    %v1284 = vsel %vm51, %v1272, 0
    %v1287 = vsel %vm58, %v1274, 0
    %1289 = vmatprep.subr.mxu0 0.0
    %1290 = vmatpush1.msra.mxu0 %v1287
    %1291 = vmatprep.subr.mxu0 0.0
    %1292 = vmatpush1.msra.mxu0 0.0
    %1293 = vmatprep.subr.mxu0 0.0
    %1294 = vmatpush1.msra.mxu0 0.0
    %1295 = vmatprep.subr.mxu0 0.0
    %1296 = vmatpush1.msra.mxu0 0.0
    %1297 = vmatprep.subr.mxu0 0.0
    %1298 = vmatpush1.msra.mxu0 0.0
    %1299 = vmatprep.subr.mxu0 0.0
    %1300 = vmatpush1.msra.mxu0 0.0
    %1301 = vmatprep.subr.mxu0 0.0
    %1302 = vmatpush1.msra.mxu0 0.0
    %1303 = vmatprep.subr.mxu0 0.0
    %1304 = vmatpush1.msra.mxu0 0.0
    %1305 = vmatprep.subr.mxu0 0.0
    %1306 = vmatpush1.msra.mxu0 0.0
    %1307 = vmatprep.subr.mxu0 0.0
    %1308 = vmatpush1.msra.mxu0 0.0
    %1309 = vmatprep.subr.mxu0 0.0
    %1310 = vmatpush1.msra.mxu0 0.0
    %1311 = vmatprep.subr.mxu0 0.0
    %1312 = vmatpush1.msra.mxu0 0.0
    %1313 = vmatprep.subr.mxu0 0.0
    %1314 = vmatpush1.msra.mxu0 0.0
    %1315 = vmatprep.subr.mxu0 0.0
    %1316 = vmatpush1.msra.mxu0 0.0
    %1317 = vmatprep.subr.mxu0 0.0
    %1318 = vmatpush1.msra.mxu0 0.0
    %1319 = vmatprep.subr.mxu0 0.0
    %1320 = vmatpush1.msra.mxu0 0.0
    %1321 = vmatprep.subr.mxu0 0.0
    %1322 = vmatpush1.msra.mxu0 0.0
    %1323 = vmatprep.subr.mxu0 0.0
    %1324 = vmatpush1.msra.mxu0 0.0
    %1325 = vmatprep.subr.mxu0 0.0
    %1326 = vmatpush1.msra.mxu0 0.0
    %1327 = vmatprep.subr.mxu0 0.0
    %1328 = vmatpush1.msra.mxu0 0.0
    %1329 = vmatprep.subr.mxu0 0.0
    %1330 = vmatpush1.msra.mxu0 0.0
    %1331 = vmatprep.subr.mxu0 0.0
    %1332 = vmatpush1.msra.mxu0 0.0
    %1333 = vmatprep.subr.mxu0 0.0
    %1334 = vmatpush1.msra.mxu0 0.0
    %1335 = vmatprep.subr.mxu0 0.0
    %1336 = vmatpush1.msra.mxu0 0.0
    %1337 = vmatprep.subr.mxu0 0.0
    %1338 = vmatpush1.msra.mxu0 0.0
    %1339 = vmatprep.subr.mxu0 0.0
    %1340 = vmatpush1.msra.mxu0 0.0
    %1341 = vmatprep.subr.mxu0 0.0
    %1342 = vmatpush1.msra.mxu0 0.0
    %1343 = vmatprep.subr.mxu0 0.0
    %1344 = vmatpush1.msra.mxu0 0.0
    %1345 = vmatprep.subr.mxu0 0.0
    %1346 = vmatpush1.msra.mxu0 0.0
    %1347 = vmatprep.subr.mxu0 0.0
    %1348 = vmatpush1.msra.mxu0 0.0
    %1349 = vmatprep.subr.mxu0 0.0
    %1350 = vmatpush1.msra.mxu0 0.0
    %1351 = vmatprep.subr.mxu0 0.0
    %1352 = vmatpush1.msra.mxu0 0.0
    %1353 = vmatprep.mubr.f32.mxu0 0.0
    %1354 = vmatmul.mubr.f32.gmra.mrb[0].mxu0 %v1284
    %v1355 = vpop.f32.mrb[0].mxu0
    %v1356 = vadd.f32 %v1281, %v1355
    %v1357 = vpop.f32.mrb[0].mxu0
    %1358 = vdwg.mxu0
    %v1359 = vadd.f32 %v679, %v1356
    %v1360 = vld [vmem:[%s680] ss:$2 sm:$0xf]
    %v1361 = vld [vmem:[%s682] ss:$2 sm:$0xf]
    %v1362 = vld [vmem:[%s1] sm:$0xf]
    %vm1363 = vcmp.lt.s32.totalorder %v1362, 1
    %v1364 = vsel %vm1363, 1, 0
    %1365 = vset.pattern.permute.xlu0 2
    %1366 = vperm.xlu0 %1365, %v1364
    %v1367 = vpop.permute.xlu0 %1366
    %vm1368 = vcmp.eq.s32.totalorder %v1367, 1
    %v1369 = vsel %vm1368, 0.0, %v1361
    %s1370 = scalar_lea.vmem %s6, 4
    %v1371 = vld [vmem:[%s1370] sm:$0xf]
    %1373 = vrot.lane.b32.xlu0 %v1371, 124
    %v1374 = vpop.permute.xlu0 %1373
    %v1376 = vsel %vm51, %v1360, 0
    %v1378 = vsel %vm58, %v1374, 0
    %1380 = vmatprep.subr.mxu0 0.0
    %1381 = vmatpush1.msra.mxu0 %v1378
    %1382 = vmatprep.subr.mxu0 0.0
    %1383 = vmatpush1.msra.mxu0 0.0
    %1384 = vmatprep.subr.mxu0 0.0
    %1385 = vmatpush1.msra.mxu0 0.0
    %1386 = vmatprep.subr.mxu0 0.0
    %1387 = vmatpush1.msra.mxu0 0.0
    %1388 = vmatprep.subr.mxu0 0.0
    %1389 = vmatpush1.msra.mxu0 0.0
    %1390 = vmatprep.subr.mxu0 0.0
    %1391 = vmatpush1.msra.mxu0 0.0
    %1392 = vmatprep.subr.mxu0 0.0
    %1393 = vmatpush1.msra.mxu0 0.0
    %1394 = vmatprep.subr.mxu0 0.0
    %1395 = vmatpush1.msra.mxu0 0.0
    %1396 = vmatprep.subr.mxu0 0.0
    %1397 = vmatpush1.msra.mxu0 0.0
    %1398 = vmatprep.subr.mxu0 0.0
    %1399 = vmatpush1.msra.mxu0 0.0
    %1400 = vmatprep.subr.mxu0 0.0
    %1401 = vmatpush1.msra.mxu0 0.0
    %1402 = vmatprep.subr.mxu0 0.0
    %1403 = vmatpush1.msra.mxu0 0.0
    %1404 = vmatprep.subr.mxu0 0.0
    %1405 = vmatpush1.msra.mxu0 0.0
    %1406 = vmatprep.subr.mxu0 0.0
    %1407 = vmatpush1.msra.mxu0 0.0
    %1408 = vmatprep.subr.mxu0 0.0
    %1409 = vmatpush1.msra.mxu0 0.0
    %1410 = vmatprep.subr.mxu0 0.0
    %1411 = vmatpush1.msra.mxu0 0.0
    %1412 = vmatprep.subr.mxu0 0.0
    %1413 = vmatpush1.msra.mxu0 0.0
    %1414 = vmatprep.subr.mxu0 0.0
    %1415 = vmatpush1.msra.mxu0 0.0
    %1416 = vmatprep.subr.mxu0 0.0
    %1417 = vmatpush1.msra.mxu0 0.0
    %1418 = vmatprep.subr.mxu0 0.0
    %1419 = vmatpush1.msra.mxu0 0.0
    %1420 = vmatprep.subr.mxu0 0.0
    %1421 = vmatpush1.msra.mxu0 0.0
    %1422 = vmatprep.subr.mxu0 0.0
    %1423 = vmatpush1.msra.mxu0 0.0
    %1424 = vmatprep.subr.mxu0 0.0
    %1425 = vmatpush1.msra.mxu0 0.0
    %1426 = vmatprep.subr.mxu0 0.0
    %1427 = vmatpush1.msra.mxu0 0.0
    %1428 = vmatprep.subr.mxu0 0.0
    %1429 = vmatpush1.msra.mxu0 0.0
    %1430 = vmatprep.subr.mxu0 0.0
    %1431 = vmatpush1.msra.mxu0 0.0
    %1432 = vmatprep.subr.mxu0 0.0
    %1433 = vmatpush1.msra.mxu0 0.0
    %1434 = vmatprep.subr.mxu0 0.0
    %1435 = vmatpush1.msra.mxu0 0.0
    %1436 = vmatprep.subr.mxu0 0.0
    %1437 = vmatpush1.msra.mxu0 0.0
    %1438 = vmatprep.subr.mxu0 0.0
    %1439 = vmatpush1.msra.mxu0 0.0
    %1440 = vmatprep.subr.mxu0 0.0
    %1441 = vmatpush1.msra.mxu0 0.0
    %1442 = vmatprep.subr.mxu0 0.0
    %1443 = vmatpush1.msra.mxu0 0.0
    %1444 = vmatprep.mubr.f32.mxu0 0.0
    %1445 = vmatmul.mubr.f32.gmra.mrb[0].mxu0 %v1376
    %v1446 = vpop.f32.mrb[0].mxu0
    %v1447 = vadd.f32 0.0, %v1446
    %v1448 = vpop.f32.mrb[0].mxu0
    %1449 = vdwg.mxu0
    %v1451 = vsel %vm51, %v1369, 0
    %v1453 = vsel %vm58, %v1371, 0
    %1455 = vmatprep.subr.mxu0 0.0
    %1456 = vmatpush1.msra.mxu0 %v1453
    %1457 = vmatprep.subr.mxu0 0.0
    %1458 = vmatpush1.msra.mxu0 0.0
    %1459 = vmatprep.subr.mxu0 0.0
    %1460 = vmatpush1.msra.mxu0 0.0
    %1461 = vmatprep.subr.mxu0 0.0
    %1462 = vmatpush1.msra.mxu0 0.0
    %1463 = vmatprep.subr.mxu0 0.0
    %1464 = vmatpush1.msra.mxu0 0.0
    %1465 = vmatprep.subr.mxu0 0.0
    %1466 = vmatpush1.msra.mxu0 0.0
    %1467 = vmatprep.subr.mxu0 0.0
    %1468 = vmatpush1.msra.mxu0 0.0
    %1469 = vmatprep.subr.mxu0 0.0
    %1470 = vmatpush1.msra.mxu0 0.0
    %1471 = vmatprep.subr.mxu0 0.0
    %1472 = vmatpush1.msra.mxu0 0.0
    %1473 = vmatprep.subr.mxu0 0.0
    %1474 = vmatpush1.msra.mxu0 0.0
    %1475 = vmatprep.subr.mxu0 0.0
    %1476 = vmatpush1.msra.mxu0 0.0
    %1477 = vmatprep.subr.mxu0 0.0
    %1478 = vmatpush1.msra.mxu0 0.0
    %1479 = vmatprep.subr.mxu0 0.0
    %1480 = vmatpush1.msra.mxu0 0.0
    %1481 = vmatprep.subr.mxu0 0.0
    %1482 = vmatpush1.msra.mxu0 0.0
    %1483 = vmatprep.subr.mxu0 0.0
    %1484 = vmatpush1.msra.mxu0 0.0
    %1485 = vmatprep.subr.mxu0 0.0
    %1486 = vmatpush1.msra.mxu0 0.0
    %1487 = vmatprep.subr.mxu0 0.0
    %1488 = vmatpush1.msra.mxu0 0.0
    %1489 = vmatprep.subr.mxu0 0.0
    %1490 = vmatpush1.msra.mxu0 0.0
    %1491 = vmatprep.subr.mxu0 0.0
    %1492 = vmatpush1.msra.mxu0 0.0
    %1493 = vmatprep.subr.mxu0 0.0
    %1494 = vmatpush1.msra.mxu0 0.0
    %1495 = vmatprep.subr.mxu0 0.0
    %1496 = vmatpush1.msra.mxu0 0.0
    %1497 = vmatprep.subr.mxu0 0.0
    %1498 = vmatpush1.msra.mxu0 0.0
    %1499 = vmatprep.subr.mxu0 0.0
    %1500 = vmatpush1.msra.mxu0 0.0
    %1501 = vmatprep.subr.mxu0 0.0
    %1502 = vmatpush1.msra.mxu0 0.0
    %1503 = vmatprep.subr.mxu0 0.0
    %1504 = vmatpush1.msra.mxu0 0.0
    %1505 = vmatprep.subr.mxu0 0.0
    %1506 = vmatpush1.msra.mxu0 0.0
    %1507 = vmatprep.subr.mxu0 0.0
    %1508 = vmatpush1.msra.mxu0 0.0
    %1509 = vmatprep.subr.mxu0 0.0
    %1510 = vmatpush1.msra.mxu0 0.0
    %1511 = vmatprep.subr.mxu0 0.0
    %1512 = vmatpush1.msra.mxu0 0.0
    %1513 = vmatprep.subr.mxu0 0.0
    %1514 = vmatpush1.msra.mxu0 0.0
    %1515 = vmatprep.subr.mxu0 0.0
    %1516 = vmatpush1.msra.mxu0 0.0
    %1517 = vmatprep.subr.mxu0 0.0
    %1518 = vmatpush1.msra.mxu0 0.0
    %1519 = vmatprep.mubr.f32.mxu0 0.0
    %1520 = vmatmul.mubr.f32.gmra.mrb[0].mxu0 %v1451
    %v1521 = vpop.f32.mrb[0].mxu0
    %v1522 = vadd.f32 %v1447, %v1521
    %v1523 = vpop.f32.mrb[0].mxu0
    %1524 = vdwg.mxu0
    %s1525 = scalar_lea.vmem %s7, 1
    %v1526 = vld [vmem:[%s1525] sm:$0x1]
    %v1528 = vlaneseq
    %v1529 = vshrl.u32 %v1528, 7
    %v1530 = vsub.s32 0, %v1529
    %v1531 = vrot.slane %v1526, %v1530
    %v1533 = vadd.f32 %v1522, %v1531
    %v1534 = vld [vmem:[%s10] sm:$0xf]
    %v1535 = vld [vmem:[%s11] sm:$0x1]
    %v1537 = vlaneseq
    %v1538 = vshrl.u32 %v1537, 7
    %v1539 = vsub.s32 0, %v1538
    %v1540 = vrot.slane %v1535, %v1539
    %v1543 = vsel %vm51, %v1533, 0
    %v1546 = vsel %vm58, %v1534, 0
    %1548 = vmatprep.subr.mxu0 0.0
    %1549 = vmatpush1.msra.mxu0 %v1546
    %1550 = vmatprep.subr.mxu0 0.0
    %1551 = vmatpush1.msra.mxu0 0.0
    %1552 = vmatprep.subr.mxu0 0.0
    %1553 = vmatpush1.msra.mxu0 0.0
    %1554 = vmatprep.subr.mxu0 0.0
    %1555 = vmatpush1.msra.mxu0 0.0
    %1556 = vmatprep.subr.mxu0 0.0
    %1557 = vmatpush1.msra.mxu0 0.0
    %1558 = vmatprep.subr.mxu0 0.0
    %1559 = vmatpush1.msra.mxu0 0.0
    %1560 = vmatprep.subr.mxu0 0.0
    %1561 = vmatpush1.msra.mxu0 0.0
    %1562 = vmatprep.subr.mxu0 0.0
    %1563 = vmatpush1.msra.mxu0 0.0
    %1564 = vmatprep.subr.mxu0 0.0
    %1565 = vmatpush1.msra.mxu0 0.0
    %1566 = vmatprep.subr.mxu0 0.0
    %1567 = vmatpush1.msra.mxu0 0.0
    %1568 = vmatprep.subr.mxu0 0.0
    %1569 = vmatpush1.msra.mxu0 0.0
    %1570 = vmatprep.subr.mxu0 0.0
    %1571 = vmatpush1.msra.mxu0 0.0
    %1572 = vmatprep.subr.mxu0 0.0
    %1573 = vmatpush1.msra.mxu0 0.0
    %1574 = vmatprep.subr.mxu0 0.0
    %1575 = vmatpush1.msra.mxu0 0.0
    %1576 = vmatprep.subr.mxu0 0.0
    %1577 = vmatpush1.msra.mxu0 0.0
    %1578 = vmatprep.subr.mxu0 0.0
    %1579 = vmatpush1.msra.mxu0 0.0
    %1580 = vmatprep.subr.mxu0 0.0
    %1581 = vmatpush1.msra.mxu0 0.0
    %1582 = vmatprep.subr.mxu0 0.0
    %1583 = vmatpush1.msra.mxu0 0.0
    %1584 = vmatprep.subr.mxu0 0.0
    %1585 = vmatpush1.msra.mxu0 0.0
    %1586 = vmatprep.subr.mxu0 0.0
    %1587 = vmatpush1.msra.mxu0 0.0
    %1588 = vmatprep.subr.mxu0 0.0
    %1589 = vmatpush1.msra.mxu0 0.0
    %1590 = vmatprep.subr.mxu0 0.0
    %1591 = vmatpush1.msra.mxu0 0.0
    %1592 = vmatprep.subr.mxu0 0.0
    %1593 = vmatpush1.msra.mxu0 0.0
    %1594 = vmatprep.subr.mxu0 0.0
    %1595 = vmatpush1.msra.mxu0 0.0
    %1596 = vmatprep.subr.mxu0 0.0
    %1597 = vmatpush1.msra.mxu0 0.0
    %1598 = vmatprep.subr.mxu0 0.0
    %1599 = vmatpush1.msra.mxu0 0.0
    %1600 = vmatprep.subr.mxu0 0.0
    %1601 = vmatpush1.msra.mxu0 0.0
    %1602 = vmatprep.subr.mxu0 0.0
    %1603 = vmatpush1.msra.mxu0 0.0
    %1604 = vmatprep.subr.mxu0 0.0
    %1605 = vmatpush1.msra.mxu0 0.0
    %1606 = vmatprep.subr.mxu0 0.0
    %1607 = vmatpush1.msra.mxu0 0.0
    %1608 = vmatprep.subr.mxu0 0.0
    %1609 = vmatpush1.msra.mxu0 0.0
    %1610 = vmatprep.subr.mxu0 0.0
    %1611 = vmatpush1.msra.mxu0 0.0
    %1612 = vmatprep.mubr.f32.mxu0 0.0
    %1613 = vmatmul.mubr.f32.gmra.mrb[0].mxu0 %v1543
    %v1614 = vpop.f32.mrb[0].mxu0
    %v1615 = vadd.f32 %v1540, %v1614
    %v1616 = vpop.f32.mrb[0].mxu0
    %1617 = vdwg.mxu0
    %v1618 = vlaneseq
    %v1619 = vshrl.u32 %v1618, 7
    %v1620 = vsub.s32 0, %v1619
    %v1621 = vrot.slane %v1359, %v1620
    %v1622 = vadd.f32 %v1615, %v1621
    %v1623 = vmax.f32 %v1622, 0.0
    %vm1624 = vcmask 58368
    %1625 = vst.msk [vmem:[#allocation3] sm:$0x3] %vm1624, %v1623
    %v1626 = vlaneseq
    %v1627 = vshrl.u32 %v1626, 7
    %v1628 = vsub.s32 1, %v1627
    %v1629 = vrot.slane %v1359, %v1628
    %v1630 = vadd.f32 %v1615, %v1629
    %v1631 = vmax.f32 %v1630, 0.0
    %vm1632 = vcmask 60418
    %1633 = vst.msk [vmem:[#allocation3] sm:$0xc] %vm1632, %v1631
    // Predicated region
    $region50: #{net_forward.1} parent=1 // pred_check
      _
    $region51: #{net_forward.1} parent=1 // pred_check_branch
      %1635 = sbr.rel (0) target = $region53
    $region52: #{net_forward.1} parent=1 // pred_region
      %s1637 = ssub.s32 64, 64
      %1638 = vsyncadd [#allocation4], %s1637
      %s1640 = sshll.u32 [#allocation3], 4
      %s1641 = int_to_ptr.vmem [resolvable:$true] %s1640
      %1643 = dma.vmem_to_hbm [thread:$0]  %s1641, 64, %s12, [#allocation4]
    $region53: #{net_forward.1} parent=1 // pred_fallthru
      _
    // Predicated region
    $region54: #{net_forward.1} parent=1 // pred_check
      _
    $region55: #{net_forward.1} parent=1 // pred_check_branch
      %1645 = sbr.rel (0) target = $region57
    $region56: #{net_forward.1} parent=1 // pred_region
      %1646 = dma.done [#allocation4], 64
    $region57: #{net_forward.1} parent=1 // pred_fallthru
      _
    %1647 = vsyncpa [#allocation4], 1

</llo_original>
